<compile_context>
chip_gen: v6e
topology: v6e:2x2x1
jax: 0.10.0
libtpu: 0.0.40
codegen_flags: <defaults>
</compile_context>

<pallas_src>
import functools

import jax
import jax.numpy as jnp
from jax import lax
from jax.experimental import pallas as pl
from jax.experimental.pallas import tpu as pltpu


def _mha_fused_kernel(x_ref, wqkv_ref, wproj_ref, bproj_ref, o_ref, cat_ref, *,
                      num_heads, head_size):
    """Fused multi-head causal self-attention for one (Bt, T, C) batch tile.

    x_ref    : (Bt, T, C)     f32 activations (cast to bf16 in-kernel)
    wqkv_ref : (C, 3*H*D)     bf16 packed [q*scale | k | v] projection weights
    wproj_ref: (H*D, C)       bf16 output-projection weight (transposed)
    bproj_ref: (1, C)         f32 output-projection bias
    o_ref    : (Bt, T, C)     output
    cat_ref  : (Bt*T, H*D)    f32 VMEM scratch holding concatenated head outputs
    """
    H, D = num_heads, head_size
    HD = H * D
    Bt, T, C = x_ref.shape
    M = Bt * T

    # Load f32, cast to bf16 in-kernel (no extra wrapper-side HBM pass on x).
    x = x_ref[...].reshape(M, C).astype(jnp.bfloat16)            # (M, C)

    # Fused QKV projection: one wide MXU matmul over all folded batch rows.
    # 1/sqrt(D) is already folded into the q columns of wqkv.
    qkv = jnp.dot(x, wqkv_ref[...],
                  preferred_element_type=jnp.float32)            # (M, 3HD) f32
    qkv = qkv.astype(jnp.bfloat16)                               # single cast

    # Causal mask, shared across batch elements and heads.  Large finite
    # negative (diagonal never masked -> no 0/0 in the softmax).
    row = lax.broadcasted_iota(jnp.int32, (T, T), 0)
    col = lax.broadcasted_iota(jnp.int32, (T, T), 1)
    causal = col <= row
    neg_big = jnp.float32(-1e30)

    # Per (batch-element, head) attention.  Each head's output is written
    # straight into the (M, HD) scratch at lane offset h*D — no list/concat.
    for b in range(Bt):
        r0 = b * T
        for h in range(H):
            qh = qkv[r0:r0 + T, h * D:(h + 1) * D]                       # (T, D)
            kh = qkv[r0:r0 + T, HD + h * D: HD + (h + 1) * D]            # (T, D)
            vh = qkv[r0:r0 + T, 2 * HD + h * D: 2 * HD + (h + 1) * D]    # (T, D)

            # q @ k^T without materializing a transpose: contract last dims.
            s = lax.dot_general(qh, kh,
                                dimension_numbers=(((1,), (1,)), ((), ())),
                                preferred_element_type=jnp.float32)      # (T, T)
            s = jnp.where(causal, s, neg_big)

            # Stable softmax; the reciprocal goes to the EUP slot.
            s = s - jnp.max(s, axis=-1, keepdims=True)
            p = jnp.exp(s)
            p = p * pl.reciprocal(jnp.sum(p, axis=-1, keepdims=True), approx=True)

            oh = jnp.dot(p.astype(jnp.bfloat16), vh,
                         preferred_element_type=jnp.float32)             # (T, D)
            cat_ref[r0:r0 + T, h * D:(h + 1) * D] = oh

    # Output projection + bias over all folded rows, single lane-dense store.
    y = jnp.dot(cat_ref[...].astype(jnp.bfloat16), wproj_ref[...],
                preferred_element_type=jnp.float32)              # (M, C) f32
    y = y + bproj_ref[...]                                       # (1, C) broadcasts
    o_ref[...] = y.reshape(Bt, T, C).astype(o_ref.dtype)


def pack_mha_weights(wq, wk, wv, w_proj_t, b_proj):
    """One-time weight packing.  Call ONCE outside the per-step hot path.

    wq/wk/wv : (H, C, D) per-head (pre-transposed) projection weights
    w_proj_t : (H*D, C) output projection (transposed), b_proj: (C,)
    Returns (wqkv bf16 (C, 3*H*D), wproj bf16 (H*D, C), bproj f32 (1, C)).
    Column layout of wqkv: [q_h0 | ... | q_h{H-1} | k_h0 | ... | v_h{H-1}].
    The 1/sqrt(D) attention scale is folded into the q columns.
    """
    H, C, D = wq.shape
    HD = H * D
    scale = jnp.float32(D) ** -0.5
    wqkv = jnp.concatenate(
        [(wq * scale).transpose(1, 0, 2).reshape(C, HD),
         wk.transpose(1, 0, 2).reshape(C, HD),
         wv.transpose(1, 0, 2).reshape(C, HD)],
        axis=1).astype(jnp.bfloat16)                             # (C, 3*H*D)
    wproj = w_proj_t.astype(jnp.bfloat16)                        # (H*D, C)
    bproj = b_proj.reshape(1, C).astype(jnp.float32)             # (1, C)
    return wqkv, wproj, bproj


def _pick_batch_tile(batch, seq_len):
    """Fold batch elements per grid step so projections see M = Bt*T rows
    (~256-row MXU), while keeping >= 2 grid steps when batch >= 2 so both
    v7x TensorCores get work."""
    if batch <= 1:
        return 1
    bt = max(1, min(batch // 2, max(1, 256 // seq_len)))
    while batch % bt:
        bt -= 1
    return bt


@functools.partial(jax.jit, static_argnames=("num_heads", "head_size", "out_dtype"))
def multi_head_attention(x, wqkv, wproj, bproj, *, num_heads, head_size,
                         out_dtype=jnp.float32):
    """x: (B, T, C) f32; wqkv/wproj/bproj: outputs of pack_mha_weights.
    Returns (B, T, C) in out_dtype (default f32)."""
    B, T, C = x.shape
    H, D = num_heads, head_size
    HD = H * D
    Bt = _pick_batch_tile(B, T)
    M = Bt * T

    kernel = functools.partial(_mha_fused_kernel, num_heads=H, head_size=D)

    return pl.pallas_call(
        kernel,
        out_shape=jax.ShapeDtypeStruct((B, T, C), out_dtype),
        grid=(B // Bt,),
        in_specs=[
            pl.BlockSpec((Bt, T, C), lambda g: (g, 0, 0)),
            # Constant index maps -> weights stay resident across grid steps.
            pl.BlockSpec((C, 3 * HD), lambda g: (0, 0)),
            pl.BlockSpec((HD, C), lambda g: (0, 0)),
            pl.BlockSpec((1, C), lambda g: (0, 0)),
        ],
        out_specs=pl.BlockSpec((Bt, T, C), lambda g: (g, 0, 0)),
        scratch_shapes=[pltpu.VMEM((M, HD), jnp.float32)],
        compiler_params=pltpu.CompilerParams(
            dimension_semantics=("parallel",)),   # >=2 steps -> shards over v7x TCs
    )(x, wqkv, wproj, bproj)


def _reference(x, wq, wk, wv, w_proj_t, b_proj):
    """Pure-JAX f32 reference reproducing the PyTorch forward (eval mode)."""
    B, T, C = x.shape
    H, _, D = wq.shape
    q = jnp.einsum("btc,hcd->bhtd", x, wq)
    k = jnp.einsum("btc,hcd->bhtd", x, wk)
    v = jnp.einsum("btc,hcd->bhtd", x, wv)
    s = jnp.einsum("bhtd,bhsd->bhts", q, k) * (D ** -0.5)
    mask = jnp.tril(jnp.ones((T, T), dtype=bool))
    s = jnp.where(mask, s, -jnp.inf)
    p = jax.nn.softmax(s, axis=-1)
    o = jnp.einsum("bhts,bhsd->bhtd", p, v)
    cat = jnp.transpose(o, (0, 2, 1, 3)).reshape(B, T, H * D)
    return cat @ w_proj_t + b_proj


if __name__ == "__main__":
    # Small, tile-aligned shapes consistent with the module's forward
    # (T <= block_size=128; proj is Linear(H*D -> n_embd)).  B=4 exercises the
    # batch-folding path (Bt=2, grid of 2 parallel steps).
    B, T = 4, 32
    n_embd = 128
    num_heads = 4
    head_size = 32

    key = jax.random.PRNGKey(0)
    kx, kq, kk, kv, kp, kb = jax.random.split(key, 6)

    x = jax.random.normal(kx, (B, T, n_embd), dtype=jnp.float32)

    # PyTorch nn.Linear(n_embd, head_size, bias=False): weight (D, C); we store
    # the transposed per-head stack (H, C, D). uniform(-1/sqrt(C), 1/sqrt(C)).
    lim = 1.0 / (n_embd ** 0.5)
    wq = jax.random.uniform(kq, (num_heads, n_embd, head_size), jnp.float32, -lim, lim)
    wk = jax.random.uniform(kk, (num_heads, n_embd, head_size), jnp.float32, -lim, lim)
    wv = jax.random.uniform(kv, (num_heads, n_embd, head_size), jnp.float32, -lim, lim)

    # proj: nn.Linear(H*D, n_embd) -> weight^T (H*D, n_embd), bias (n_embd,)
    hd = num_heads * head_size
    lim_p = 1.0 / (hd ** 0.5)
    w_proj_t = jax.random.uniform(kp, (hd, n_embd), jnp.float32, -lim_p, lim_p)
    b_proj = jax.random.uniform(kb, (n_embd,), jnp.float32, -lim_p, lim_p)

    # One-time packing, hoisted out of the per-call path.
    wqkv, wproj, bproj = pack_mha_weights(wq, wk, wv, w_proj_t, b_proj)

    out = multi_head_attention(x, wqkv, wproj, bproj,
                               num_heads=num_heads, head_size=head_size)
    out = jax.block_until_ready(out)

    ref = _reference(x, wq, wk, wv, w_proj_t, b_proj)
    assert out.shape == (B, T, n_embd)
    # bf16 matmuls (f32 accumulation) + approx reciprocal vs. pure-f32 reference.
    assert jnp.allclose(out, ref, atol=5e-2, rtol=5e-2), "mismatch vs reference"

    print("KERNEL_OK")
</pallas_src>

<mosaic_0001>
module attributes {stable_mosaic.version = 11 : i64} {
  func.func @_mha_fused_kernel(%arg0: i32, %arg1: memref<2x32x128xf32, #tpu.memory_space<vmem>>, %arg2: memref<128x384xbf16, #tpu.memory_space<vmem>>, %arg3: memref<128x128xbf16, #tpu.memory_space<vmem>>, %arg4: memref<1x128xf32, #tpu.memory_space<vmem>>, %arg5: memref<2x32x128xf32, #tpu.memory_space<vmem>>, %arg6: memref<64x128xf32, #tpu.memory_space<vmem>>) attributes {dimension_semantics = [#tpu.dimension_semantics<parallel>], iteration_bounds = array<i64: 2>, scalar_prefetch = 0 : i64, scratch_operands = 1 : i64, tpu.core_type = #tpu.core_type<tc>, window_params = [{transform_indices = @transform_0, window_bounds = array<i64: 2, 32, 128>}, {pipeline_mode = #tpu.pipeline_mode<synchronous>, transform_indices = @transform_1, window_bounds = array<i64: 128, 384>}, {pipeline_mode = #tpu.pipeline_mode<synchronous>, transform_indices = @transform_2, window_bounds = array<i64: 128, 128>}, {pipeline_mode = #tpu.pipeline_mode<synchronous>, transform_indices = @transform_3, window_bounds = array<i64: 1, 128>}, {transform_indices = @transform_4, window_bounds = array<i64: 2, 32, 128>}]} {
    %c0 = arith.constant 0 : index
    %c0_0 = arith.constant 0 : index
    %c0_1 = arith.constant 0 : index
    %0 = vector.load %arg1[%c0, %c0_0, %c0_1] : memref<2x32x128xf32, #tpu.memory_space<vmem>>, vector<2x32x128xf32>
    %1 = vector.shape_cast %0 : vector<2x32x128xf32> to vector<64x128xf32>
    %2 = arith.truncf %1 : vector<64x128xf32> to vector<64x128xbf16>
    %c0_2 = arith.constant 0 : index
    %c0_3 = arith.constant 0 : index
    %3 = vector.load %arg2[%c0_2, %c0_3] : memref<128x384xbf16, #tpu.memory_space<vmem>>, vector<128x384xbf16>
    %cst = arith.constant dense<0.000000e+00> : vector<64x384xf32>
    %4 = tpu.matmul %2, %3, %cst {dimension_numbers = #tpu.dot_dimension_numbers<[1], [0], [0], [1], [0, 0, 1, 1], [], []>} : vector<64x128xbf16>, vector<128x384xbf16>, vector<64x384xf32> -> vector<64x384xf32>
    %5 = arith.truncf %4 : vector<64x384xf32> to vector<64x384xbf16>
    %6 = tpu.iota {dimensions = array<i32: 0>} : vector<32x32xi32>
    %7 = tpu.iota {dimensions = array<i32: 1>} : vector<32x32xi32>
    %8 = arith.cmpi sle, %7, %6 : vector<32x32xi32>
    %9 = vector.extract_strided_slice %5 {offsets = [0, 0], sizes = [32, 32], strides = [1, 1]} : vector<64x384xbf16> to vector<32x32xbf16>
    %10 = vector.extract_strided_slice %5 {offsets = [0, 128], sizes = [32, 32], strides = [1, 1]} : vector<64x384xbf16> to vector<32x32xbf16>
    %11 = vector.extract_strided_slice %5 {offsets = [0, 256], sizes = [32, 32], strides = [1, 1]} : vector<64x384xbf16> to vector<32x32xbf16>
    %cst_4 = arith.constant dense<0.000000e+00> : vector<32x32xf32>
    %12 = tpu.matmul %9, %10, %cst_4 {dimension_numbers = #tpu.dot_dimension_numbers<[1], [1], [0], [0], [0, 0, 1, 0], [], []>} : vector<32x32xbf16>, vector<32x32xbf16>, vector<32x32xf32> -> vector<32x32xf32>
    %cst_5 = arith.constant -1.000000e+30 : f32
    %13 = vector.broadcast %cst_5 : f32 to vector<32x32xf32>
    %14 = arith.select %8, %12, %13 : vector<32x32xi1>, vector<32x32xf32>
    %cst_6 = arith.constant dense<0xFF800000> : vector<32xf32>
    %15 = vector.multi_reduction <maximumf>, %14, %cst_6 [1] : vector<32x32xf32> to vector<32xf32>
    %16 = vector.shape_cast %15 : vector<32xf32> to vector<32x1xf32>
    %17 = vector.broadcast %16 : vector<32x1xf32> to vector<32x32xf32>
    %18 = arith.subf %14, %17 : vector<32x32xf32>
    %19 = math.exp %18 : vector<32x32xf32>
    %cst_7 = arith.constant dense<0.000000e+00> : vector<32xf32>
    %20 = vector.multi_reduction <add>, %19, %cst_7 [1] : vector<32x32xf32> to vector<32xf32>
    %21 = vector.shape_cast %20 : vector<32xf32> to vector<32x1xf32>
    %22 = tpu.reciprocal %21 {approx = true} : vector<32x1xf32> -> vector<32x1xf32>
    %23 = vector.broadcast %22 : vector<32x1xf32> to vector<32x32xf32>
    %24 = arith.mulf %19, %23 : vector<32x32xf32>
    %25 = arith.truncf %24 : vector<32x32xf32> to vector<32x32xbf16>
    %cst_8 = arith.constant dense<0.000000e+00> : vector<32x32xf32>
    %26 = tpu.matmul %25, %11, %cst_8 {dimension_numbers = #tpu.dot_dimension_numbers<[1], [0], [0], [1], [0, 0, 1, 1], [], []>} : vector<32x32xbf16>, vector<32x32xbf16>, vector<32x32xf32> -> vector<32x32xf32>
    %c0_9 = arith.constant 0 : index
    %c0_10 = arith.constant 0 : index
    %27 = vector.load %arg6[%c0_9, %c0_10] : memref<64x128xf32, #tpu.memory_space<vmem>>, vector<32x32xf32>
    tpu.vector_store %arg6[%c0_9, %c0_10], %26 {strides = array<i32>} : memref<64x128xf32, #tpu.memory_space<vmem>>, vector<32x32xf32>,
    %28 = vector.extract_strided_slice %5 {offsets = [0, 32], sizes = [32, 32], strides = [1, 1]} : vector<64x384xbf16> to vector<32x32xbf16>
    %29 = vector.extract_strided_slice %5 {offsets = [0, 160], sizes = [32, 32], strides = [1, 1]} : vector<64x384xbf16> to vector<32x32xbf16>
    %30 = vector.extract_strided_slice %5 {offsets = [0, 288], sizes = [32, 32], strides = [1, 1]} : vector<64x384xbf16> to vector<32x32xbf16>
    %cst_11 = arith.constant dense<0.000000e+00> : vector<32x32xf32>
    %31 = tpu.matmul %28, %29, %cst_11 {dimension_numbers = #tpu.dot_dimension_numbers<[1], [1], [0], [0], [0, 0, 1, 0], [], []>} : vector<32x32xbf16>, vector<32x32xbf16>, vector<32x32xf32> -> vector<32x32xf32>
    %cst_12 = arith.constant -1.000000e+30 : f32
    %32 = vector.broadcast %cst_12 : f32 to vector<32x32xf32>
    %33 = arith.select %8, %31, %32 : vector<32x32xi1>, vector<32x32xf32>
    %cst_13 = arith.constant dense<0xFF800000> : vector<32xf32>
    %34 = vector.multi_reduction <maximumf>, %33, %cst_13 [1] : vector<32x32xf32> to vector<32xf32>
    %35 = vector.shape_cast %34 : vector<32xf32> to vector<32x1xf32>
    %36 = vector.broadcast %35 : vector<32x1xf32> to vector<32x32xf32>
    %37 = arith.subf %33, %36 : vector<32x32xf32>
    %38 = math.exp %37 : vector<32x32xf32>
    %cst_14 = arith.constant dense<0.000000e+00> : vector<32xf32>
    %39 = vector.multi_reduction <add>, %38, %cst_14 [1] : vector<32x32xf32> to vector<32xf32>
    %40 = vector.shape_cast %39 : vector<32xf32> to vector<32x1xf32>
    %41 = tpu.reciprocal %40 {approx = true} : vector<32x1xf32> -> vector<32x1xf32>
    %42 = vector.broadcast %41 : vector<32x1xf32> to vector<32x32xf32>
    %43 = arith.mulf %38, %42 : vector<32x32xf32>
    %44 = arith.truncf %43 : vector<32x32xf32> to vector<32x32xbf16>
    %cst_15 = arith.constant dense<0.000000e+00> : vector<32x32xf32>
    %45 = tpu.matmul %44, %30, %cst_15 {dimension_numbers = #tpu.dot_dimension_numbers<[1], [0], [0], [1], [0, 0, 1, 1], [], []>} : vector<32x32xbf16>, vector<32x32xbf16>, vector<32x32xf32> -> vector<32x32xf32>
    %c0_16 = arith.constant 0 : index
    %c32 = arith.constant 32 : index
    %46 = vector.load %arg6[%c0_16, %c32] : memref<64x128xf32, #tpu.memory_space<vmem>>, vector<32x32xf32>
    tpu.vector_store %arg6[%c0_16, %c32], %45 {strides = array<i32>} : memref<64x128xf32, #tpu.memory_space<vmem>>, vector<32x32xf32>,
    %47 = vector.extract_strided_slice %5 {offsets = [0, 64], sizes = [32, 32], strides = [1, 1]} : vector<64x384xbf16> to vector<32x32xbf16>
    %48 = vector.extract_strided_slice %5 {offsets = [0, 192], sizes = [32, 32], strides = [1, 1]} : vector<64x384xbf16> to vector<32x32xbf16>
    %49 = vector.extract_strided_slice %5 {offsets = [0, 320], sizes = [32, 32], strides = [1, 1]} : vector<64x384xbf16> to vector<32x32xbf16>
    %cst_17 = arith.constant dense<0.000000e+00> : vector<32x32xf32>
    %50 = tpu.matmul %47, %48, %cst_17 {dimension_numbers = #tpu.dot_dimension_numbers<[1], [1], [0], [0], [0, 0, 1, 0], [], []>} : vector<32x32xbf16>, vector<32x32xbf16>, vector<32x32xf32> -> vector<32x32xf32>
    %cst_18 = arith.constant -1.000000e+30 : f32
    %51 = vector.broadcast %cst_18 : f32 to vector<32x32xf32>
    %52 = arith.select %8, %50, %51 : vector<32x32xi1>, vector<32x32xf32>
    %cst_19 = arith.constant dense<0xFF800000> : vector<32xf32>
    %53 = vector.multi_reduction <maximumf>, %52, %cst_19 [1] : vector<32x32xf32> to vector<32xf32>
    %54 = vector.shape_cast %53 : vector<32xf32> to vector<32x1xf32>
    %55 = vector.broadcast %54 : vector<32x1xf32> to vector<32x32xf32>
    %56 = arith.subf %52, %55 : vector<32x32xf32>
    %57 = math.exp %56 : vector<32x32xf32>
    %cst_20 = arith.constant dense<0.000000e+00> : vector<32xf32>
    %58 = vector.multi_reduction <add>, %57, %cst_20 [1] : vector<32x32xf32> to vector<32xf32>
    %59 = vector.shape_cast %58 : vector<32xf32> to vector<32x1xf32>
    %60 = tpu.reciprocal %59 {approx = true} : vector<32x1xf32> -> vector<32x1xf32>
    %61 = vector.broadcast %60 : vector<32x1xf32> to vector<32x32xf32>
    %62 = arith.mulf %57, %61 : vector<32x32xf32>
    %63 = arith.truncf %62 : vector<32x32xf32> to vector<32x32xbf16>
    %cst_21 = arith.constant dense<0.000000e+00> : vector<32x32xf32>
    %64 = tpu.matmul %63, %49, %cst_21 {dimension_numbers = #tpu.dot_dimension_numbers<[1], [0], [0], [1], [0, 0, 1, 1], [], []>} : vector<32x32xbf16>, vector<32x32xbf16>, vector<32x32xf32> -> vector<32x32xf32>
    %c0_22 = arith.constant 0 : index
    %c64 = arith.constant 64 : index
    %65 = vector.load %arg6[%c0_22, %c64] : memref<64x128xf32, #tpu.memory_space<vmem>>, vector<32x32xf32>
    tpu.vector_store %arg6[%c0_22, %c64], %64 {strides = array<i32>} : memref<64x128xf32, #tpu.memory_space<vmem>>, vector<32x32xf32>,
    %66 = vector.extract_strided_slice %5 {offsets = [0, 96], sizes = [32, 32], strides = [1, 1]} : vector<64x384xbf16> to vector<32x32xbf16>
    %67 = vector.extract_strided_slice %5 {offsets = [0, 224], sizes = [32, 32], strides = [1, 1]} : vector<64x384xbf16> to vector<32x32xbf16>
    %68 = vector.extract_strided_slice %5 {offsets = [0, 352], sizes = [32, 32], strides = [1, 1]} : vector<64x384xbf16> to vector<32x32xbf16>
    %cst_23 = arith.constant dense<0.000000e+00> : vector<32x32xf32>
    %69 = tpu.matmul %66, %67, %cst_23 {dimension_numbers = #tpu.dot_dimension_numbers<[1], [1], [0], [0], [0, 0, 1, 0], [], []>} : vector<32x32xbf16>, vector<32x32xbf16>, vector<32x32xf32> -> vector<32x32xf32>
    %cst_24 = arith.constant -1.000000e+30 : f32
    %70 = vector.broadcast %cst_24 : f32 to vector<32x32xf32>
    %71 = arith.select %8, %69, %70 : vector<32x32xi1>, vector<32x32xf32>
    %cst_25 = arith.constant dense<0xFF800000> : vector<32xf32>
    %72 = vector.multi_reduction <maximumf>, %71, %cst_25 [1] : vector<32x32xf32> to vector<32xf32>
    %73 = vector.shape_cast %72 : vector<32xf32> to vector<32x1xf32>
    %74 = vector.broadcast %73 : vector<32x1xf32> to vector<32x32xf32>
    %75 = arith.subf %71, %74 : vector<32x32xf32>
    %76 = math.exp %75 : vector<32x32xf32>
    %cst_26 = arith.constant dense<0.000000e+00> : vector<32xf32>
    %77 = vector.multi_reduction <add>, %76, %cst_26 [1] : vector<32x32xf32> to vector<32xf32>
    %78 = vector.shape_cast %77 : vector<32xf32> to vector<32x1xf32>
    %79 = tpu.reciprocal %78 {approx = true} : vector<32x1xf32> -> vector<32x1xf32>
    %80 = vector.broadcast %79 : vector<32x1xf32> to vector<32x32xf32>
    %81 = arith.mulf %76, %80 : vector<32x32xf32>
    %82 = arith.truncf %81 : vector<32x32xf32> to vector<32x32xbf16>
    %cst_27 = arith.constant dense<0.000000e+00> : vector<32x32xf32>
    %83 = tpu.matmul %82, %68, %cst_27 {dimension_numbers = #tpu.dot_dimension_numbers<[1], [0], [0], [1], [0, 0, 1, 1], [], []>} : vector<32x32xbf16>, vector<32x32xbf16>, vector<32x32xf32> -> vector<32x32xf32>
    %c0_28 = arith.constant 0 : index
    %c96 = arith.constant 96 : index
    %84 = vector.load %arg6[%c0_28, %c96] : memref<64x128xf32, #tpu.memory_space<vmem>>, vector<32x32xf32>
    tpu.vector_store %arg6[%c0_28, %c96], %83 {strides = array<i32>} : memref<64x128xf32, #tpu.memory_space<vmem>>, vector<32x32xf32>,
    %85 = vector.extract_strided_slice %5 {offsets = [32, 0], sizes = [32, 32], strides = [1, 1]} : vector<64x384xbf16> to vector<32x32xbf16>
    %86 = vector.extract_strided_slice %5 {offsets = [32, 128], sizes = [32, 32], strides = [1, 1]} : vector<64x384xbf16> to vector<32x32xbf16>
    %87 = vector.extract_strided_slice %5 {offsets = [32, 256], sizes = [32, 32], strides = [1, 1]} : vector<64x384xbf16> to vector<32x32xbf16>
    %cst_29 = arith.constant dense<0.000000e+00> : vector<32x32xf32>
    %88 = tpu.matmul %85, %86, %cst_29 {dimension_numbers = #tpu.dot_dimension_numbers<[1], [1], [0], [0], [0, 0, 1, 0], [], []>} : vector<32x32xbf16>, vector<32x32xbf16>, vector<32x32xf32> -> vector<32x32xf32>
    %cst_30 = arith.constant -1.000000e+30 : f32
    %89 = vector.broadcast %cst_30 : f32 to vector<32x32xf32>
    %90 = arith.select %8, %88, %89 : vector<32x32xi1>, vector<32x32xf32>
    %cst_31 = arith.constant dense<0xFF800000> : vector<32xf32>
    %91 = vector.multi_reduction <maximumf>, %90, %cst_31 [1] : vector<32x32xf32> to vector<32xf32>
    %92 = vector.shape_cast %91 : vector<32xf32> to vector<32x1xf32>
    %93 = vector.broadcast %92 : vector<32x1xf32> to vector<32x32xf32>
    %94 = arith.subf %90, %93 : vector<32x32xf32>
    %95 = math.exp %94 : vector<32x32xf32>
    %cst_32 = arith.constant dense<0.000000e+00> : vector<32xf32>
    %96 = vector.multi_reduction <add>, %95, %cst_32 [1] : vector<32x32xf32> to vector<32xf32>
    %97 = vector.shape_cast %96 : vector<32xf32> to vector<32x1xf32>
    %98 = tpu.reciprocal %97 {approx = true} : vector<32x1xf32> -> vector<32x1xf32>
    %99 = vector.broadcast %98 : vector<32x1xf32> to vector<32x32xf32>
    %100 = arith.mulf %95, %99 : vector<32x32xf32>
    %101 = arith.truncf %100 : vector<32x32xf32> to vector<32x32xbf16>
    %cst_33 = arith.constant dense<0.000000e+00> : vector<32x32xf32>
    %102 = tpu.matmul %101, %87, %cst_33 {dimension_numbers = #tpu.dot_dimension_numbers<[1], [0], [0], [1], [0, 0, 1, 1], [], []>} : vector<32x32xbf16>, vector<32x32xbf16>, vector<32x32xf32> -> vector<32x32xf32>
    %c32_34 = arith.constant 32 : index
    %c0_35 = arith.constant 0 : index
    %103 = vector.load %arg6[%c32_34, %c0_35] : memref<64x128xf32, #tpu.memory_space<vmem>>, vector<32x32xf32>
    tpu.vector_store %arg6[%c32_34, %c0_35], %102 {strides = array<i32>} : memref<64x128xf32, #tpu.memory_space<vmem>>, vector<32x32xf32>,
    %104 = vector.extract_strided_slice %5 {offsets = [32, 32], sizes = [32, 32], strides = [1, 1]} : vector<64x384xbf16> to vector<32x32xbf16>
    %105 = vector.extract_strided_slice %5 {offsets = [32, 160], sizes = [32, 32], strides = [1, 1]} : vector<64x384xbf16> to vector<32x32xbf16>
    %106 = vector.extract_strided_slice %5 {offsets = [32, 288], sizes = [32, 32], strides = [1, 1]} : vector<64x384xbf16> to vector<32x32xbf16>
    %cst_36 = arith.constant dense<0.000000e+00> : vector<32x32xf32>
    %107 = tpu.matmul %104, %105, %cst_36 {dimension_numbers = #tpu.dot_dimension_numbers<[1], [1], [0], [0], [0, 0, 1, 0], [], []>} : vector<32x32xbf16>, vector<32x32xbf16>, vector<32x32xf32> -> vector<32x32xf32>
    %cst_37 = arith.constant -1.000000e+30 : f32
    %108 = vector.broadcast %cst_37 : f32 to vector<32x32xf32>
    %109 = arith.select %8, %107, %108 : vector<32x32xi1>, vector<32x32xf32>
    %cst_38 = arith.constant dense<0xFF800000> : vector<32xf32>
    %110 = vector.multi_reduction <maximumf>, %109, %cst_38 [1] : vector<32x32xf32> to vector<32xf32>
    %111 = vector.shape_cast %110 : vector<32xf32> to vector<32x1xf32>
    %112 = vector.broadcast %111 : vector<32x1xf32> to vector<32x32xf32>
    %113 = arith.subf %109, %112 : vector<32x32xf32>
    %114 = math.exp %113 : vector<32x32xf32>
    %cst_39 = arith.constant dense<0.000000e+00> : vector<32xf32>
    %115 = vector.multi_reduction <add>, %114, %cst_39 [1] : vector<32x32xf32> to vector<32xf32>
    %116 = vector.shape_cast %115 : vector<32xf32> to vector<32x1xf32>
    %117 = tpu.reciprocal %116 {approx = true} : vector<32x1xf32> -> vector<32x1xf32>
    %118 = vector.broadcast %117 : vector<32x1xf32> to vector<32x32xf32>
    %119 = arith.mulf %114, %118 : vector<32x32xf32>
    %120 = arith.truncf %119 : vector<32x32xf32> to vector<32x32xbf16>
    %cst_40 = arith.constant dense<0.000000e+00> : vector<32x32xf32>
    %121 = tpu.matmul %120, %106, %cst_40 {dimension_numbers = #tpu.dot_dimension_numbers<[1], [0], [0], [1], [0, 0, 1, 1], [], []>} : vector<32x32xbf16>, vector<32x32xbf16>, vector<32x32xf32> -> vector<32x32xf32>
    %c32_41 = arith.constant 32 : index
    %c32_42 = arith.constant 32 : index
    %122 = vector.load %arg6[%c32_41, %c32_42] : memref<64x128xf32, #tpu.memory_space<vmem>>, vector<32x32xf32>
    tpu.vector_store %arg6[%c32_41, %c32_42], %121 {strides = array<i32>} : memref<64x128xf32, #tpu.memory_space<vmem>>, vector<32x32xf32>,
    %123 = vector.extract_strided_slice %5 {offsets = [32, 64], sizes = [32, 32], strides = [1, 1]} : vector<64x384xbf16> to vector<32x32xbf16>
    %124 = vector.extract_strided_slice %5 {offsets = [32, 192], sizes = [32, 32], strides = [1, 1]} : vector<64x384xbf16> to vector<32x32xbf16>
    %125 = vector.extract_strided_slice %5 {offsets = [32, 320], sizes = [32, 32], strides = [1, 1]} : vector<64x384xbf16> to vector<32x32xbf16>
    %cst_43 = arith.constant dense<0.000000e+00> : vector<32x32xf32>
    %126 = tpu.matmul %123, %124, %cst_43 {dimension_numbers = #tpu.dot_dimension_numbers<[1], [1], [0], [0], [0, 0, 1, 0], [], []>} : vector<32x32xbf16>, vector<32x32xbf16>, vector<32x32xf32> -> vector<32x32xf32>
    %cst_44 = arith.constant -1.000000e+30 : f32
    %127 = vector.broadcast %cst_44 : f32 to vector<32x32xf32>
    %128 = arith.select %8, %126, %127 : vector<32x32xi1>, vector<32x32xf32>
    %cst_45 = arith.constant dense<0xFF800000> : vector<32xf32>
    %129 = vector.multi_reduction <maximumf>, %128, %cst_45 [1] : vector<32x32xf32> to vector<32xf32>
    %130 = vector.shape_cast %129 : vector<32xf32> to vector<32x1xf32>
    %131 = vector.broadcast %130 : vector<32x1xf32> to vector<32x32xf32>
    %132 = arith.subf %128, %131 : vector<32x32xf32>
    %133 = math.exp %132 : vector<32x32xf32>
    %cst_46 = arith.constant dense<0.000000e+00> : vector<32xf32>
    %134 = vector.multi_reduction <add>, %133, %cst_46 [1] : vector<32x32xf32> to vector<32xf32>
    %135 = vector.shape_cast %134 : vector<32xf32> to vector<32x1xf32>
    %136 = tpu.reciprocal %135 {approx = true} : vector<32x1xf32> -> vector<32x1xf32>
    %137 = vector.broadcast %136 : vector<32x1xf32> to vector<32x32xf32>
    %138 = arith.mulf %133, %137 : vector<32x32xf32>
    %139 = arith.truncf %138 : vector<32x32xf32> to vector<32x32xbf16>
    %cst_47 = arith.constant dense<0.000000e+00> : vector<32x32xf32>
    %140 = tpu.matmul %139, %125, %cst_47 {dimension_numbers = #tpu.dot_dimension_numbers<[1], [0], [0], [1], [0, 0, 1, 1], [], []>} : vector<32x32xbf16>, vector<32x32xbf16>, vector<32x32xf32> -> vector<32x32xf32>
    %c32_48 = arith.constant 32 : index
    %c64_49 = arith.constant 64 : index
    %141 = vector.load %arg6[%c32_48, %c64_49] : memref<64x128xf32, #tpu.memory_space<vmem>>, vector<32x32xf32>
    tpu.vector_store %arg6[%c32_48, %c64_49], %140 {strides = array<i32>} : memref<64x128xf32, #tpu.memory_space<vmem>>, vector<32x32xf32>,
    %142 = vector.extract_strided_slice %5 {offsets = [32, 96], sizes = [32, 32], strides = [1, 1]} : vector<64x384xbf16> to vector<32x32xbf16>
    %143 = vector.extract_strided_slice %5 {offsets = [32, 224], sizes = [32, 32], strides = [1, 1]} : vector<64x384xbf16> to vector<32x32xbf16>
    %144 = vector.extract_strided_slice %5 {offsets = [32, 352], sizes = [32, 32], strides = [1, 1]} : vector<64x384xbf16> to vector<32x32xbf16>
    %cst_50 = arith.constant dense<0.000000e+00> : vector<32x32xf32>
    %145 = tpu.matmul %142, %143, %cst_50 {dimension_numbers = #tpu.dot_dimension_numbers<[1], [1], [0], [0], [0, 0, 1, 0], [], []>} : vector<32x32xbf16>, vector<32x32xbf16>, vector<32x32xf32> -> vector<32x32xf32>
    %cst_51 = arith.constant -1.000000e+30 : f32
    %146 = vector.broadcast %cst_51 : f32 to vector<32x32xf32>
    %147 = arith.select %8, %145, %146 : vector<32x32xi1>, vector<32x32xf32>
    %cst_52 = arith.constant dense<0xFF800000> : vector<32xf32>
    %148 = vector.multi_reduction <maximumf>, %147, %cst_52 [1] : vector<32x32xf32> to vector<32xf32>
    %149 = vector.shape_cast %148 : vector<32xf32> to vector<32x1xf32>
    %150 = vector.broadcast %149 : vector<32x1xf32> to vector<32x32xf32>
    %151 = arith.subf %147, %150 : vector<32x32xf32>
    %152 = math.exp %151 : vector<32x32xf32>
    %cst_53 = arith.constant dense<0.000000e+00> : vector<32xf32>
    %153 = vector.multi_reduction <add>, %152, %cst_53 [1] : vector<32x32xf32> to vector<32xf32>
    %154 = vector.shape_cast %153 : vector<32xf32> to vector<32x1xf32>
    %155 = tpu.reciprocal %154 {approx = true} : vector<32x1xf32> -> vector<32x1xf32>
    %156 = vector.broadcast %155 : vector<32x1xf32> to vector<32x32xf32>
    %157 = arith.mulf %152, %156 : vector<32x32xf32>
    %158 = arith.truncf %157 : vector<32x32xf32> to vector<32x32xbf16>
    %cst_54 = arith.constant dense<0.000000e+00> : vector<32x32xf32>
    %159 = tpu.matmul %158, %144, %cst_54 {dimension_numbers = #tpu.dot_dimension_numbers<[1], [0], [0], [1], [0, 0, 1, 1], [], []>} : vector<32x32xbf16>, vector<32x32xbf16>, vector<32x32xf32> -> vector<32x32xf32>
    %c32_55 = arith.constant 32 : index
    %c96_56 = arith.constant 96 : index
    %160 = vector.load %arg6[%c32_55, %c96_56] : memref<64x128xf32, #tpu.memory_space<vmem>>, vector<32x32xf32>
    tpu.vector_store %arg6[%c32_55, %c96_56], %159 {strides = array<i32>} : memref<64x128xf32, #tpu.memory_space<vmem>>, vector<32x32xf32>,
    %c0_57 = arith.constant 0 : index
    %c0_58 = arith.constant 0 : index
    %161 = vector.load %arg6[%c0_57, %c0_58] : memref<64x128xf32, #tpu.memory_space<vmem>>, vector<64x128xf32>
    %162 = arith.truncf %161 : vector<64x128xf32> to vector<64x128xbf16>
    %c0_59 = arith.constant 0 : index
    %c0_60 = arith.constant 0 : index
    %163 = vector.load %arg3[%c0_59, %c0_60] : memref<128x128xbf16, #tpu.memory_space<vmem>>, vector<128x128xbf16>
    %cst_61 = arith.constant dense<0.000000e+00> : vector<64x128xf32>
    %164 = tpu.matmul %162, %163, %cst_61 {dimension_numbers = #tpu.dot_dimension_numbers<[1], [0], [0], [1], [0, 0, 1, 1], [], []>} : vector<64x128xbf16>, vector<128x128xbf16>, vector<64x128xf32> -> vector<64x128xf32>
    %c0_62 = arith.constant 0 : index
    %c0_63 = arith.constant 0 : index
    %165 = vector.load %arg4[%c0_62, %c0_63] : memref<1x128xf32, #tpu.memory_space<vmem>>, vector<1x128xf32>
    %166 = vector.broadcast %165 : vector<1x128xf32> to vector<64x128xf32>
    %167 = arith.addf %164, %166 : vector<64x128xf32>
    %168 = vector.shape_cast %167 : vector<64x128xf32> to vector<2x32x128xf32>
    %c0_64 = arith.constant 0 : index
    %c0_65 = arith.constant 0 : index
    %c0_66 = arith.constant 0 : index
    %169 = vector.load %arg5[%c0_64, %c0_65, %c0_66] : memref<2x32x128xf32, #tpu.memory_space<vmem>>, vector<2x32x128xf32>
    tpu.vector_store %arg5[%c0_64, %c0_65, %c0_66], %168 {strides = array<i32>} : memref<2x32x128xf32, #tpu.memory_space<vmem>>, vector<2x32x128xf32>,
    return
  }
  func.func @transform_0(%arg0: i32) -> (i32, i32, i32) {
    %c0_i32 = arith.constant 0 : i32
    %c0_i32_0 = arith.constant 0 : i32
    %c0_i32_1 = arith.constant 0 : i32
    return %arg0, %c0_i32, %c0_i32_0 : i32, i32, i32
  }
  func.func @transform_1(%arg0: i32) -> (i32, i32) {
    %c0_i32 = arith.constant 0 : i32
    %c0_i32_0 = arith.constant 0 : i32
    %c0_i32_1 = arith.constant 0 : i32
    return %c0_i32, %c0_i32_0 : i32, i32
  }
  func.func @transform_2(%arg0: i32) -> (i32, i32) {
    %c0_i32 = arith.constant 0 : i32
    %c0_i32_0 = arith.constant 0 : i32
    %c0_i32_1 = arith.constant 0 : i32
    return %c0_i32, %c0_i32_0 : i32, i32
  }
  func.func @transform_3(%arg0: i32) -> (i32, i32) {
    %c0_i32 = arith.constant 0 : i32
    %c0_i32_0 = arith.constant 0 : i32
    %c0_i32_1 = arith.constant 0 : i32
    return %c0_i32, %c0_i32_0 : i32, i32
  }
  func.func @transform_4(%arg0: i32) -> (i32, i32, i32) {
    %c0_i32 = arith.constant 0 : i32
    %c0_i32_0 = arith.constant 0 : i32
    %c0_i32_1 = arith.constant 0 : i32
    return %arg0, %c0_i32, %c0_i32_0 : i32, i32, i32
  }
}

</mosaic_0001>

<llo_original>
// kernel: multi_head_attention.1
$region0: #{multi_head_attention.1}
  #allocation0 [shape = 'u32[]', space=smem, size = 0x4, offset = 0x4, fixed_abs, tag = 'smem constant byte address 0x4 - core index']
  #allocation1 [shape = 'u32[144,128]{1,0:T(1,128)}', space=vmem, size = 0x12000, scoped, tag = 'internal scratch']
  #allocation2 [shape = 'f32[64,128]{1,0:T(8,128)}', space=vmem, size = 0x8000, scoped, tag = 'scratch operand']
  %s0 = inlined_call_operand.hbm [shape: f32[4,32,128], index: 0, kind: input, shape index: {}]
  %s1 = inlined_call_operand.hbm [shape: bf16[128,384], index: 1, kind: input, shape index: {}]
  %s2 = inlined_call_operand.hbm [shape: bf16[128,128], index: 2, kind: input, shape index: {}]
  %s3 = inlined_call_operand.vmem [shape: f32[1,128], index: 3, kind: input, shape index: {}]
  %s4 = inlined_call_operand.hbm [shape: f32[4,32,128], index: 4, kind: output, shape index: {}]
  %s5 = sld [smem:[#allocation0]]
  $region61: #{multi_head_attention.1} parent=0
    _
  %s7 = ssub.s32 1, %s5
  %s8 = scalar_select 0, %s7, %s5
  $region1: #{multi_head_attention.1} parent=0
    #allocation3 [shape = 'u8[65536]{0}', space=vmem, size = 0x10000, scoped, tag = 'input window, operand 0']
    #allocation4 [shape = 's32[2]{0}', space=sflag, size = 0x8, scoped, tag = 'scoped memory for multi_head_attention.1']
    #allocation5 [shape = 's32[2]{0}', space=sflag, size = 0x8, scoped, tag = 'scoped memory for multi_head_attention.1']
    #allocation6 [shape = 'u8[98304]{0}', space=vmem, size = 0x18000, scoped, tag = 'input window, operand 1, single buffered']
    #allocation7 [shape = 's32[1]{0}', space=sflag, size = 0x4, scoped, tag = 'scoped memory for multi_head_attention.1']
    #allocation8 [shape = 'u8[32768]{0}', space=vmem, size = 0x8000, scoped, tag = 'input window, operand 2, single buffered']
    #allocation9 [shape = 'u8[65536]{0}', space=vmem, size = 0x10000, scoped, tag = 'output window, operand 0']
    %9 = vsyncpa [#allocation4], 0
    %s10 = scalar_lea.sflag [#allocation4], 1
    %11 = vsyncpa %s10, 0
    %12 = vsyncpa [#allocation7], 0
    %13 = vsyncpa [#allocation5], 0
    %s14 = scalar_lea.sflag [#allocation5], 1
    %15 = vsyncpa %s14, 0
    loop: start=0, step=1, limit=4
    $region2: #{multi_head_attention.1} parent=1 // loop_pre_header
      _
    $region3: #{multi_head_attention.1} parent=1 // loop_header
      %s17 = sphi 0, %s21
      %p18 = scmp.ge.s32.totalorder %s17, 4
      %s27 = sphi 0, %s29
      %s30 = sphi 0, %s27
      %s31 = sphi 0, %s30
      %s47 = sphi 0, %s31
      %s51 = sphi 0, %s51
      %s53 = sphi 0, %s51
      %s54 = sphi 0, %s53
      %s68 = sphi 0, %s54
      %s72 = sphi 0, %s72
      %s74 = sphi 0, %s72
      %s75 = sphi 0, %s74
      %s89 = sphi 0, %s75
      %s93 = sphi 0, %s93
      %s95 = sphi 0, %s93
      %s96 = sphi 0, %s95
      %s110 = sphi 0, %s96
      %s116 = sphi 0, %s118
      %s119 = sphi 0, %s116
      %s120 = sphi 0, %s119
      %s136 = sphi 0, %s120
    $region4: #{multi_head_attention.1} parent=1 // loop_header_branch
      %20 = sbr.rel (%p18) target = $region8
    $region5: #{multi_head_attention.1} parent=1 // loop_body
      %s22 = ssub.s32 %s17, 1
      %s23 = ssub.s32 %s17, 2
      %s24 = sadd.s32 %s17, 1
      %s25 = ssub.s32 %s17, %s24
      %p26 = scmp.eq.s32.totalorder %s25, 0
      %s28 = sadd.s32 %s27, 1
      %s29 = scalar_select %p26, %s27, %s28
      %p32 = pneg %p26
      %p33 = scmp.eq.s32.totalorder %s17, 1
      %p34 = por %p32, %p33
      %p35 = scmp.ne.s32.totalorder %s27, %s30
      %p36 = scmp.eq.s32.totalorder %s17, 0
      %p37 = por %p35, %p36
      %p38 = scmp.ne.s32.totalorder %s27, %s30
      %p39 = scmp.eq.s32.totalorder %s22, 1
      %p40 = por %p38, %p39
      %p41 = scmp.ne.s32.totalorder %s30, %s31
      %p42 = scmp.eq.s32.totalorder %s22, 0
      %p43 = por %p41, %p42
      %p44 = scmp.ne.s32.totalorder %s30, %s31
      %p45 = scmp.eq.s32.totalorder %s23, 1
      %p46 = por %p44, %p45
      %p48 = scmp.ne.s32.totalorder %s31, %s47
      %p49 = scmp.eq.s32.totalorder %s23, 0
      %p50 = por %p48, %p49
      %s52 = sadd.s32 %s51, 1
      %p55 = scmp.eq.s32.totalorder %s17, 1
      %p56 = scmp.ne.s32.totalorder %s51, %s53
      %p57 = scmp.eq.s32.totalorder %s17, 0
      %p58 = por %p56, %p57
      %p59 = scmp.ne.s32.totalorder %s51, %s53
      %p60 = scmp.eq.s32.totalorder %s22, 1
      %p61 = por %p59, %p60
      %p62 = scmp.ne.s32.totalorder %s53, %s54
      %p63 = scmp.eq.s32.totalorder %s22, 0
      %p64 = por %p62, %p63
      %p65 = scmp.ne.s32.totalorder %s53, %s54
      %p66 = scmp.eq.s32.totalorder %s23, 1
      %p67 = por %p65, %p66
      %p69 = scmp.ne.s32.totalorder %s54, %s68
      %p70 = scmp.eq.s32.totalorder %s23, 0
      %p71 = por %p69, %p70
      %s73 = sadd.s32 %s72, 1
      %p76 = scmp.eq.s32.totalorder %s17, 1
      %p77 = scmp.ne.s32.totalorder %s72, %s74
      %p78 = scmp.eq.s32.totalorder %s17, 0
      %p79 = por %p77, %p78
      %p80 = scmp.ne.s32.totalorder %s72, %s74
      %p81 = scmp.eq.s32.totalorder %s22, 1
      %p82 = por %p80, %p81
      %p83 = scmp.ne.s32.totalorder %s74, %s75
      %p84 = scmp.eq.s32.totalorder %s22, 0
      %p85 = por %p83, %p84
      %p86 = scmp.ne.s32.totalorder %s74, %s75
      %p87 = scmp.eq.s32.totalorder %s23, 1
      %p88 = por %p86, %p87
      %p90 = scmp.ne.s32.totalorder %s75, %s89
      %p91 = scmp.eq.s32.totalorder %s23, 0
      %p92 = por %p90, %p91
      %s94 = sadd.s32 %s93, 1
      %p97 = scmp.eq.s32.totalorder %s17, 1
      %p98 = scmp.ne.s32.totalorder %s93, %s95
      %p99 = scmp.eq.s32.totalorder %s17, 0
      %p100 = por %p98, %p99
      %p101 = scmp.ne.s32.totalorder %s93, %s95
      %p102 = scmp.eq.s32.totalorder %s22, 1
      %p103 = por %p101, %p102
      %p104 = scmp.ne.s32.totalorder %s95, %s96
      %p105 = scmp.eq.s32.totalorder %s22, 0
      %p106 = por %p104, %p105
      %p107 = scmp.ne.s32.totalorder %s95, %s96
      %p108 = scmp.eq.s32.totalorder %s23, 1
      %p109 = por %p107, %p108
      %p111 = scmp.ne.s32.totalorder %s96, %s110
      %p112 = scmp.eq.s32.totalorder %s23, 0
      %p113 = por %p111, %p112
      %s114 = ssub.s32 %s17, %s24
      %p115 = scmp.eq.s32.totalorder %s114, 0
      %s117 = sadd.s32 %s116, 1
      %s118 = scalar_select %p115, %s116, %s117
      %p121 = pneg %p115
      %p122 = scmp.eq.s32.totalorder %s17, 1
      %p123 = por %p121, %p122
      %p124 = scmp.ne.s32.totalorder %s116, %s119
      %p125 = scmp.eq.s32.totalorder %s17, 0
      %p126 = por %p124, %p125
      %p127 = scmp.ne.s32.totalorder %s116, %s119
      %p128 = scmp.eq.s32.totalorder %s22, 1
      %p129 = por %p127, %p128
      %p130 = scmp.ne.s32.totalorder %s119, %s120
      %p131 = scmp.eq.s32.totalorder %s22, 0
      %p132 = por %p130, %p131
      %p133 = scmp.ne.s32.totalorder %s119, %s120
      %p134 = scmp.eq.s32.totalorder %s23, 1
      %p135 = por %p133, %p134
      %p137 = scmp.ne.s32.totalorder %s120, %s136
      %p138 = scmp.eq.s32.totalorder %s23, 0
      %p139 = por %p137, %p138
      %p140 = scmp.le.s32.totalorder 1, %s17
      %p141 = scmp.lt.s32.totalorder %s17, 3
      %p142 = pnand %p140, %p141
      %p143 = pneg %p142
      // Predicated region
      $region9: #{multi_head_attention.1} parent=5 // pred_check
        _
      $region10: #{multi_head_attention.1} parent=5 // pred_check_branch
        %145 = sbr.rel (%p142) target = $region12
      $region11: #{multi_head_attention.1} parent=5 // pred_region
        %s146 = ssub.s32 %s17, 1
        // Predicated region
        $region13: #{multi_head_attention.1} parent=11 // pred_check
          %p147 = pneg %p64
        $region14: #{multi_head_attention.1} parent=11 // pred_check_branch
          %149 = sbr.rel (%p147) target = $region16
        $region15: #{multi_head_attention.1} parent=11 // pred_region
          %s151 = ssub.s32 3072, 3072
          %152 = vsyncadd [#allocation7], %s151
          %s153 = sshll.u32 [#allocation6], 4
          %s154 = int_to_ptr.vmem [resolvable:$true] %s153
          %159 = dma.hbm_to_vmem [thread:$0]  %s1, 3072, %s154, [#allocation7], 192, 192, 12
        $region16: #{multi_head_attention.1} parent=11 // pred_fallthru
          _
        // Predicated region
        $region17: #{multi_head_attention.1} parent=11 // pred_check
          %p160 = pneg %p85
        $region18: #{multi_head_attention.1} parent=11 // pred_check_branch
          %162 = sbr.rel (%p160) target = $region20
        $region19: #{multi_head_attention.1} parent=11 // pred_region
          %s164 = ssub.s32 1024, 1024
          %165 = vsyncadd [#allocation7], %s164
          %s166 = sshll.u32 [#allocation8], 4
          %s167 = int_to_ptr.vmem [resolvable:$true] %s166
          %172 = dma.hbm_to_vmem [thread:$0]  %s2, 1024, %s167, [#allocation7], 64, 64, 4
        $region20: #{multi_head_attention.1} parent=11 // pred_fallthru
          _
        // Predicated region
        $region21: #{multi_head_attention.1} parent=11 // pred_check
          %p173 = pneg %p106
        $region22: #{multi_head_attention.1} parent=11 // pred_check_branch
          %175 = sbr.rel (%p173) target = $region24
        $region23: #{multi_head_attention.1} parent=11 // pred_region
          _
        $region24: #{multi_head_attention.1} parent=11 // pred_fallthru
          _
      $region12: #{multi_head_attention.1} parent=5 // pred_fallthru
        _
      %p176 = scmp.lt.s32.totalorder %s17, 2
      // Predicated region
      $region25: #{multi_head_attention.1} parent=5 // pred_check
        %p177 = pneg %p176
      $region26: #{multi_head_attention.1} parent=5 // pred_check_branch
        %179 = sbr.rel (%p177) target = $region28
      $region27: #{multi_head_attention.1} parent=5 // pred_region
        // Predicated region
        $region29: #{multi_head_attention.1} parent=27 // pred_check
          %p180 = pneg %p37
        $region30: #{multi_head_attention.1} parent=27 // pred_check_branch
          %182 = sbr.rel (%p180) target = $region32
        $region31: #{multi_head_attention.1} parent=27 // pred_region
          %s183 = sand.u32 %s27, 1
          %s184 = scalar_lea.sflag [#allocation4], %s183
          %s185 = sand.u32 %s27, 1
          %s186 = smul.addr %s185, 64
          %s187 = scalar_lea.vmem [#allocation3], %s186
          %s188 = smul.u32 2, %s17
          %s190 = ssub.s32 1024, 1024
          %191 = vsyncadd %s184, %s190
          %s192 = smul.addr %s188, 4
          %s193 = smul.addr %s192, 128
          %s194 = scalar_lea.hbm %s0, %s193
          %s195 = sshll.u32 %s187, 4
          %s196 = int_to_ptr.vmem [resolvable:$true] %s195
          %201 = dma.hbm_to_vmem [thread:$0]  %s194, 1024, %s196, %s184, 128, 128, 8
        $region32: #{multi_head_attention.1} parent=27 // pred_fallthru
          _
      $region28: #{multi_head_attention.1} parent=5 // pred_fallthru
        _
      %p202 = scmp.le.s32.totalorder 1, %s17
      %p203 = scmp.lt.s32.totalorder %s17, 3
      %p204 = pnand %p202, %p203
      %p205 = pneg %p204
      // Predicated region
      $region33: #{multi_head_attention.1} parent=5 // pred_check
        _
      $region34: #{multi_head_attention.1} parent=5 // pred_check_branch
        %207 = sbr.rel (%p204) target = $region36
      $region35: #{multi_head_attention.1} parent=5 // pred_region
        %s208 = ssub.s32 %s17, 1
        %s209 = sand.u32 %s30, 1
        %s210 = scalar_lea.sflag [#allocation4], %s209
        %s211 = sand.u32 %s30, 1
        %s212 = smul.addr %s211, 64
        %s213 = scalar_lea.vmem [#allocation3], %s212
        // Predicated region
        $region37: #{multi_head_attention.1} parent=35 // pred_check
          %p214 = pneg %p43
        $region38: #{multi_head_attention.1} parent=35 // pred_check_branch
          %216 = sbr.rel (%p214) target = $region40
        $region39: #{multi_head_attention.1} parent=35 // pred_region
          %217 = dma.done %s210, 1024
        $region40: #{multi_head_attention.1} parent=35 // pred_fallthru
          _
        // Predicated region
        $region41: #{multi_head_attention.1} parent=35 // pred_check
          %p218 = pneg %p64
        $region42: #{multi_head_attention.1} parent=35 // pred_check_branch
          %220 = sbr.rel (%p218) target = $region44
        $region43: #{multi_head_attention.1} parent=35 // pred_region
          %221 = dma.done [#allocation7], 3072
        $region44: #{multi_head_attention.1} parent=35 // pred_fallthru
          _
        // Predicated region
        $region45: #{multi_head_attention.1} parent=35 // pred_check
          %p222 = pneg %p85
        $region46: #{multi_head_attention.1} parent=35 // pred_check_branch
          %224 = sbr.rel (%p222) target = $region48
        $region47: #{multi_head_attention.1} parent=35 // pred_region
          %225 = dma.done [#allocation7], 1024
        $region48: #{multi_head_attention.1} parent=35 // pred_fallthru
          _
        %s226 = sand.u32 %s30, 1
        %s227 = scalar_lea.sflag [#allocation4], %s226
        %s228 = sand.u32 %s30, 1
        %s229 = smul.addr %s228, 64
        %s230 = scalar_lea.vmem [#allocation3], %s229
        %p231 = pneg %p43
        %p232 = pneg %p40
        %p233 = pneg %p64
        %p234 = pneg %p61
        %p235 = pneg %p85
        %p236 = pneg %p82
        %p237 = pneg %p106
        %p238 = pneg %p103
        %p239 = pneg %p132
        %p240 = pneg %p129
        %s241 = sand.u32 %s119, 1
        %s242 = scalar_lea.sflag [#allocation5], %s241
        %s243 = sand.u32 %s119, 1
        %s244 = smul.addr %s243, 64
        %s245 = scalar_lea.vmem [#allocation9], %s244
        %s246 = smul.u32 2, %s22
        %s247 = smul.u32 2, %s22
        %v249 = vld [vmem:[%s213] sm:$0xff]
        %v250 = vld [vmem:[%s213 + $0x8] sm:$0xff]
        %v251 = vld [vmem:[%s213 + $0x10] sm:$0xff]
        %v252 = vld [vmem:[%s213 + $0x18] sm:$0xff]
        %v253 = vld [vmem:[%s213 + $0x20] sm:$0xff]
        %v254 = vld [vmem:[%s213 + $0x28] sm:$0xff]
        %v255 = vld [vmem:[%s213 + $0x30] sm:$0xff]
        %v256 = vld [vmem:[%s213 + $0x38] sm:$0xff]
        %v257 = vpack.c.bf16 %v250, %v249
        %v258 = vpack.c.bf16 %v252, %v251
        %v259 = vpack.c.bf16 %v254, %v253
        %v260 = vpack.c.bf16 %v256, %v255
        %v261 = vld [vmem:[#allocation6] sm:$0xff]
        %v262 = vld [vmem:[#allocation6 + $0x8] sm:$0xf]
        %v263 = vld [vmem:[#allocation6 + $0xc] sm:$0xff]
        %v264 = vld [vmem:[#allocation6 + $0x14] sm:$0xf]
        %v265 = vld [vmem:[#allocation6 + $0x18] sm:$0xff]
        %v266 = vld [vmem:[#allocation6 + $0x20] sm:$0xf]
        %v267 = vld [vmem:[#allocation6 + $0x24] sm:$0xff]
        %v268 = vld [vmem:[#allocation6 + $0x2c] sm:$0xf]
        %v269 = vld [vmem:[#allocation6 + $0x30] sm:$0xff]
        %v270 = vld [vmem:[#allocation6 + $0x38] sm:$0xf]
        %v271 = vld [vmem:[#allocation6 + $0x3c] sm:$0xff]
        %v272 = vld [vmem:[#allocation6 + $0x44] sm:$0xf]
        %v273 = vld [vmem:[#allocation6 + $0x48] sm:$0xff]
        %v274 = vld [vmem:[#allocation6 + $0x50] sm:$0xf]
        %v275 = vld [vmem:[#allocation6 + $0x54] sm:$0xff]
        %v276 = vld [vmem:[#allocation6 + $0x5c] sm:$0xf]
        %v277 = vld [vmem:[#allocation6 + $0x60] sm:$0xff]
        %v278 = vld [vmem:[#allocation6 + $0x68] sm:$0xf]
        %v279 = vld [vmem:[#allocation6 + $0x6c] sm:$0xff]
        %v280 = vld [vmem:[#allocation6 + $0x74] sm:$0xf]
        %v281 = vld [vmem:[#allocation6 + $0x78] sm:$0xff]
        %v282 = vld [vmem:[#allocation6 + $0x80] sm:$0xf]
        %v283 = vld [vmem:[#allocation6 + $0x84] sm:$0xff]
        %v284 = vld [vmem:[#allocation6 + $0x8c] sm:$0xf]
        %v285 = vld [vmem:[#allocation6 + $0x90] sm:$0xff]
        %v286 = vld [vmem:[#allocation6 + $0x98] sm:$0xf]
        %v287 = vld [vmem:[#allocation6 + $0x9c] sm:$0xff]
        %v288 = vld [vmem:[#allocation6 + $0xa4] sm:$0xf]
        %v289 = vld [vmem:[#allocation6 + $0xa8] sm:$0xff]
        %v290 = vld [vmem:[#allocation6 + $0xb0] sm:$0xf]
        %v291 = vld [vmem:[#allocation6 + $0xb4] sm:$0xff]
        %v292 = vld [vmem:[#allocation6 + $0xbc] sm:$0xf]
        %v325 = vunpack.c.l.b16 %v261
        %v326 = vunpack.c.h.b16 %v261
        %v327 = vunpack.c.l.b16 %v262
        %v328 = vunpack.c.l.b16 %v263
        %v329 = vunpack.c.h.b16 %v263
        %v330 = vunpack.c.l.b16 %v264
        %v331 = vunpack.c.l.b16 %v265
        %v332 = vunpack.c.h.b16 %v265
        %v333 = vunpack.c.l.b16 %v266
        %v334 = vunpack.c.l.b16 %v267
        %v335 = vunpack.c.h.b16 %v267
        %v336 = vunpack.c.l.b16 %v268
        %v337 = vunpack.c.l.b16 %v269
        %v338 = vunpack.c.h.b16 %v269
        %v339 = vunpack.c.l.b16 %v270
        %v340 = vunpack.c.l.b16 %v271
        %v341 = vunpack.c.h.b16 %v271
        %v342 = vunpack.c.l.b16 %v272
        %v343 = vunpack.c.l.b16 %v273
        %v344 = vunpack.c.h.b16 %v273
        %v345 = vunpack.c.l.b16 %v274
        %v346 = vunpack.c.l.b16 %v275
        %v347 = vunpack.c.h.b16 %v275
        %v348 = vunpack.c.l.b16 %v276
        %v349 = vunpack.c.l.b16 %v277
        %v350 = vunpack.c.h.b16 %v277
        %v351 = vunpack.c.l.b16 %v278
        %v352 = vunpack.c.l.b16 %v279
        %v353 = vunpack.c.h.b16 %v279
        %v354 = vunpack.c.l.b16 %v280
        %v355 = vunpack.c.l.b16 %v281
        %v356 = vunpack.c.h.b16 %v281
        %v357 = vunpack.c.l.b16 %v282
        %v358 = vunpack.c.l.b16 %v283
        %v359 = vunpack.c.h.b16 %v283
        %v360 = vunpack.c.l.b16 %v284
        %v361 = vunpack.c.l.b16 %v285
        %v362 = vunpack.c.h.b16 %v285
        %v363 = vunpack.c.l.b16 %v286
        %v364 = vunpack.c.l.b16 %v287
        %v365 = vunpack.c.h.b16 %v287
        %v366 = vunpack.c.l.b16 %v288
        %v367 = vunpack.c.l.b16 %v289
        %v368 = vunpack.c.h.b16 %v289
        %v369 = vunpack.c.l.b16 %v290
        %v370 = vunpack.c.l.b16 %v291
        %v371 = vunpack.c.h.b16 %v291
        %v372 = vunpack.c.l.b16 %v292
        %v373 = vpack.c.b16 %v328, %v325
        %v374 = vpack.c.b16 %v329, %v326
        %v375 = vpack.c.b16 %v330, %v327
        %v376 = vpack.c.b16 %v334, %v331
        %v377 = vpack.c.b16 %v335, %v332
        %v378 = vpack.c.b16 %v336, %v333
        %v379 = vpack.c.b16 %v340, %v337
        %v380 = vpack.c.b16 %v341, %v338
        %v381 = vpack.c.b16 %v342, %v339
        %v382 = vpack.c.b16 %v346, %v343
        %v383 = vpack.c.b16 %v347, %v344
        %v384 = vpack.c.b16 %v348, %v345
        %v385 = vpack.c.b16 %v352, %v349
        %v386 = vpack.c.b16 %v353, %v350
        %v387 = vpack.c.b16 %v354, %v351
        %v388 = vpack.c.b16 %v358, %v355
        %v389 = vpack.c.b16 %v359, %v356
        %v390 = vpack.c.b16 %v360, %v357
        %v391 = vpack.c.b16 %v364, %v361
        %v392 = vpack.c.b16 %v365, %v362
        %v393 = vpack.c.b16 %v366, %v363
        %v394 = vpack.c.b16 %v370, %v367
        %v395 = vpack.c.b16 %v371, %v368
        %v396 = vpack.c.b16 %v372, %v369
        %421 = vmatprep.subr.bf16.mxu0 %v395
        %422 = vmatpush1.bf16.msra.mxu0 %v394
        %423 = vmatprep.subr.bf16.mxu0 %v392
        %424 = vmatpush1.bf16.msra.mxu0 %v391
        %425 = vmatprep.subr.bf16.mxu0 %v389
        %426 = vmatpush1.bf16.msra.mxu0 %v388
        %427 = vmatprep.subr.bf16.mxu0 %v386
        %428 = vmatpush1.bf16.msra.mxu0 %v385
        %429 = vmatprep.subr.bf16.mxu0 %v383
        %430 = vmatpush1.bf16.msra.mxu0 %v382
        %431 = vmatprep.subr.bf16.mxu0 %v380
        %432 = vmatpush1.bf16.msra.mxu0 %v379
        %433 = vmatprep.subr.bf16.mxu0 %v377
        %434 = vmatpush1.bf16.msra.mxu0 %v376
        %435 = vmatprep.subr.bf16.mxu0 %v374
        %436 = vmatpush1.bf16.msra.mxu0 %v373
        %437 = vmatprep.subr.bf16.mxu0 0
        %438 = vmatpush2.bf16.msra.mxu0 0
        %439 = vmatprep.subr.bf16.mxu0 0
        %440 = vmatpush2.bf16.msra.mxu0 0
        %441 = vmatprep.subr.bf16.mxu0 0
        %442 = vmatpush2.bf16.msra.mxu0 0
        %443 = vmatprep.subr.bf16.mxu0 0
        %444 = vmatpush2.bf16.msra.mxu0 0
        %445 = vmatprep.subr.bf16.mxu0 0
        %446 = vmatpush2.bf16.msra.mxu0 0
        %447 = vmatprep.subr.bf16.mxu0 0
        %448 = vmatpush2.bf16.msra.mxu0 0
        %449 = vmatprep.subr.bf16.mxu0 0
        %450 = vmatpush2.bf16.msra.mxu0 0
        %451 = vmatprep.subr.bf16.mxu0 0
        %452 = vmatpush2.bf16.msra.mxu0 0
        %453 = vmatprep.mubr.bf16.mxu0 0
        %454 = vmatmul.mubr.bf16.gmra.mxu0 %v257
        %v455 = vpop.f32.mrf.mxu0
        %v456 = vadd.f32 0.0, %v455
        %v457 = vpop.f32.mrf.mxu0
        %v458 = vadd.f32 0.0, %v457
        %v459 = vpop.f32.mrf.mxu0
        %v460 = vadd.f32 0.0, %v459
        %v461 = vpop.f32.mrf.mxu0
        %v462 = vadd.f32 0.0, %v461
        %463 = vmatprep.mubr.bf16.mxu0 0
        %464 = vmatmul.mubr.bf16.gmra.mxu0 %v258
        %v465 = vpop.f32.mrf.mxu0
        %v466 = vadd.f32 0.0, %v465
        %v467 = vpop.f32.mrf.mxu0
        %v468 = vadd.f32 0.0, %v467
        %v469 = vpop.f32.mrf.mxu0
        %v470 = vadd.f32 0.0, %v469
        %v471 = vpop.f32.mrf.mxu0
        %v472 = vadd.f32 0.0, %v471
        %473 = vmatprep.mubr.bf16.mxu0 0
        %474 = vmatmul.mubr.bf16.gmra.mxu0 %v259
        %v475 = vpop.f32.mrf.mxu0
        %v476 = vadd.f32 0.0, %v475
        %v477 = vpop.f32.mrf.mxu0
        %v478 = vadd.f32 0.0, %v477
        %v479 = vpop.f32.mrf.mxu0
        %v480 = vadd.f32 0.0, %v479
        %v481 = vpop.f32.mrf.mxu0
        %v482 = vadd.f32 0.0, %v481
        %483 = vmatprep.mubr.bf16.mxu0 0
        %484 = vmatmul.mubr.bf16.gmra.mxu0 %v260
        %v485 = vpop.f32.mrf.mxu0
        %v486 = vadd.f32 0.0, %v485
        %v487 = vpop.f32.mrf.mxu0
        %v488 = vadd.f32 0.0, %v487
        %v489 = vpop.f32.mrf.mxu0
        %v490 = vadd.f32 0.0, %v489
        %v491 = vpop.f32.mrf.mxu0
        %v492 = vadd.f32 0.0, %v491
        %493 = vdwg.mxu0
        %494 = vmatprep.subr.bf16.mxu0 0
        %495 = vmatpush1.bf16.msra.mxu0 %v396
        %496 = vmatprep.subr.bf16.mxu0 0
        %497 = vmatpush1.bf16.msra.mxu0 %v393
        %498 = vmatprep.subr.bf16.mxu0 0
        %499 = vmatpush1.bf16.msra.mxu0 %v390
        %500 = vmatprep.subr.bf16.mxu0 0
        %501 = vmatpush1.bf16.msra.mxu0 %v387
        %502 = vmatprep.subr.bf16.mxu0 0
        %503 = vmatpush1.bf16.msra.mxu0 %v384
        %504 = vmatprep.subr.bf16.mxu0 0
        %505 = vmatpush1.bf16.msra.mxu0 %v381
        %506 = vmatprep.subr.bf16.mxu0 0
        %507 = vmatpush1.bf16.msra.mxu0 %v378
        %508 = vmatprep.subr.bf16.mxu0 0
        %509 = vmatpush1.bf16.msra.mxu0 %v375
        %510 = vmatprep.subr.bf16.mxu0 0
        %511 = vmatpush2.bf16.msra.mxu0 0
        %512 = vmatprep.subr.bf16.mxu0 0
        %513 = vmatpush2.bf16.msra.mxu0 0
        %514 = vmatprep.subr.bf16.mxu0 0
        %515 = vmatpush2.bf16.msra.mxu0 0
        %516 = vmatprep.subr.bf16.mxu0 0
        %517 = vmatpush2.bf16.msra.mxu0 0
        %518 = vmatprep.subr.bf16.mxu0 0
        %519 = vmatpush2.bf16.msra.mxu0 0
        %520 = vmatprep.subr.bf16.mxu0 0
        %521 = vmatpush2.bf16.msra.mxu0 0
        %522 = vmatprep.subr.bf16.mxu0 0
        %523 = vmatpush2.bf16.msra.mxu0 0
        %524 = vmatprep.subr.bf16.mxu0 0
        %525 = vmatpush2.bf16.msra.mxu0 0
        %526 = vmatprep.mubr.bf16.mxu0 0
        %527 = vmatmul.mubr.bf16.gmra.mxu0 %v257
        %v528 = vpop.f32.mrf.mxu0
        %v529 = vadd.f32 0.0, %v528
        %v530 = vpop.f32.mrf.mxu0
        %v531 = vpop.f32.mrf.mxu0
        %v532 = vadd.f32 0.0, %v531
        %v533 = vpop.f32.mrf.mxu0
        %534 = vmatprep.mubr.bf16.mxu0 0
        %535 = vmatmul.mubr.bf16.gmra.mxu0 %v258
        %v536 = vpop.f32.mrf.mxu0
        %v537 = vadd.f32 0.0, %v536
        %v538 = vpop.f32.mrf.mxu0
        %v539 = vpop.f32.mrf.mxu0
        %v540 = vadd.f32 0.0, %v539
        %v541 = vpop.f32.mrf.mxu0
        %542 = vmatprep.mubr.bf16.mxu0 0
        %543 = vmatmul.mubr.bf16.gmra.mxu0 %v259
        %v544 = vpop.f32.mrf.mxu0
        %v545 = vadd.f32 0.0, %v544
        %v546 = vpop.f32.mrf.mxu0
        %v547 = vpop.f32.mrf.mxu0
        %v548 = vadd.f32 0.0, %v547
        %v549 = vpop.f32.mrf.mxu0
        %550 = vmatprep.mubr.bf16.mxu0 0
        %551 = vmatmul.mubr.bf16.gmra.mxu0 %v260
        %v552 = vpop.f32.mrf.mxu0
        %v553 = vadd.f32 0.0, %v552
        %v554 = vpop.f32.mrf.mxu0
        %v555 = vpop.f32.mrf.mxu0
        %v556 = vadd.f32 0.0, %v555
        %v557 = vpop.f32.mrf.mxu0
        %558 = vdwg.mxu0
        %v559 = vpack.c.bf16 %v460, %v456
        %v560 = vpack.c.bf16 %v462, %v458
        %v561 = vpack.c.bf16 %v532, %v529
        %v562 = vpack.c.bf16 %v470, %v466
        %v563 = vpack.c.bf16 %v472, %v468
        %v564 = vpack.c.bf16 %v540, %v537
        %v565 = vpack.c.bf16 %v480, %v476
        %v566 = vpack.c.bf16 %v482, %v478
        %v567 = vpack.c.bf16 %v548, %v545
        %v568 = vpack.c.bf16 %v490, %v486
        %v569 = vpack.c.bf16 %v492, %v488
        %v570 = vpack.c.bf16 %v556, %v553
        %v571 = vlaneseq
        %v572 = vshrl.u32 %v571, 7
        %v573 = vadd.s32 %v572, 8
        %v574 = vadd.s32 %v572, 16
        %v575 = vadd.s32 %v572, 24
        %v576 = vlaneseq
        %v577 = vand.u32 %v576, 127
        %vm578 = vcmp.le.s32.totalorder %v577, %v572
        %vm579 = vcmp.le.s32.totalorder %v577, %v573
        %vm580 = vcmp.le.s32.totalorder %v577, %v574
        %vm581 = vcmp.le.s32.totalorder %v577, %v575
        %vm582 = vcmask 261120
        %v584 = vsel %vm582, %v559, 0
        %v587 = vsel %vm582, %v562, 0
        %v590 = vsel %vm582, %v560, 0
        %v593 = vsel %vm582, %v563, 0
        %595 = vmatprep.subr.bf16.mxu0 0
        %596 = vmatpush1.bf16.xpose.msra.mxu0 0
        %597 = vmatprep.subr.bf16.mxu0 0
        %598 = vmatpush1.bf16.xpose.msra.mxu0 0
        %599 = vmatprep.subr.bf16.mxu0 0
        %600 = vmatpush1.bf16.xpose.msra.mxu0 0
        %601 = vmatprep.subr.bf16.mxu0 0
        %602 = vmatpush1.bf16.xpose.msra.mxu0 0
        %603 = vmatprep.subr.bf16.mxu0 0
        %604 = vmatpush1.bf16.xpose.msra.mxu0 0
        %605 = vmatprep.subr.bf16.mxu0 0
        %606 = vmatpush1.bf16.xpose.msra.mxu0 0
        %607 = vmatprep.subr.bf16.mxu0 0
        %608 = vmatpush1.bf16.xpose.msra.mxu0 %v593
        %609 = vmatprep.subr.bf16.mxu0 0
        %610 = vmatpush1.bf16.xpose.msra.mxu0 %v590
        %611 = vmatprep.subr.bf16.mxu0 0
        %612 = vmatpush2.bf16.xpose.msra.mxu0 0
        %613 = vmatprep.subr.bf16.mxu0 0
        %614 = vmatpush2.bf16.xpose.msra.mxu0 0
        %615 = vmatprep.subr.bf16.mxu0 0
        %616 = vmatpush2.bf16.xpose.msra.mxu0 0
        %617 = vmatprep.subr.bf16.mxu0 0
        %618 = vmatpush2.bf16.xpose.msra.mxu0 0
        %619 = vmatprep.subr.bf16.mxu0 0
        %620 = vmatpush2.bf16.xpose.msra.mxu0 0
        %621 = vmatprep.subr.bf16.mxu0 0
        %622 = vmatpush2.bf16.xpose.msra.mxu0 0
        %623 = vmatprep.subr.bf16.mxu0 0
        %624 = vmatpush2.bf16.xpose.msra.mxu0 0
        %625 = vmatprep.subr.bf16.mxu0 0
        %626 = vmatpush2.bf16.xpose.msra.mxu0 0
        %627 = vmatprep.mubr.bf16.mxu0 0
        %628 = vmatmul.mubr.bf16.gmra.mxu0 %v584
        %v629 = vpop.f32.mrf.mxu0
        %v630 = vadd.f32 0.0, %v629
        %v631 = vpop.f32.mrf.mxu0
        %v632 = vpop.f32.mrf.mxu0
        %v633 = vadd.f32 0.0, %v632
        %v634 = vpop.f32.mrf.mxu0
        %635 = vmatprep.mubr.bf16.mxu0 0
        %636 = vmatmul.mubr.bf16.gmra.mxu0 %v587
        %v637 = vpop.f32.mrf.mxu0
        %v638 = vadd.f32 0.0, %v637
        %v639 = vpop.f32.mrf.mxu0
        %v640 = vpop.f32.mrf.mxu0
        %v641 = vadd.f32 0.0, %v640
        %v642 = vpop.f32.mrf.mxu0
        %643 = vdwg.mxu0
        %v644 = vsel %vm578, %v630, -1e+30
        %v645 = vsel %vm579, %v633, -1e+30
        %v646 = vsel %vm580, %v638, -1e+30
        %v647 = vsel %vm581, %v641, -1e+30
        %v648 = vsel %vm582, %v644, -inf
        %649 = vmax.xlane.f32.xlu0 %v648
        %v650 = vpop.xlane.xlu0 %649
        %v651 = vsel %vm582, %v645, -inf
        %652 = vmax.xlane.f32.xlu0 %v651
        %v653 = vpop.xlane.xlu0 %652
        %v654 = vsel %vm582, %v646, -inf
        %655 = vmax.xlane.f32.xlu0 %v654
        %v656 = vpop.xlane.xlu0 %655
        %v657 = vsel %vm582, %v647, -inf
        %658 = vmax.xlane.f32.xlu0 %v657
        %v659 = vpop.xlane.xlu0 %658
        %v660 = vsub.f32 %v644, %v650
        %v661 = vsub.f32 %v645, %v653
        %v662 = vsub.f32 %v646, %v656
        %v663 = vsub.f32 %v647, %v659
        %v664 = vmul.f32 %v660, 1.442695
        %v665 = vpow.pop %v664
        %v666 = vmul.f32 %v661, 1.442695
        %v667 = vpow.pop %v666
        %v668 = vmul.f32 %v662, 1.442695
        %v669 = vpow.pop %v668
        %v670 = vmul.f32 %v663, 1.442695
        %v671 = vpow.pop %v670
        %v672 = vsel %vm582, %v665, 0.0
        %673 = vadd.xlane.f32.xlu0 %v672
        %v674 = vpop.xlane.xlu0 %673
        %v675 = vsel %vm582, %v667, 0.0
        %676 = vadd.xlane.f32.xlu0 %v675
        %v677 = vpop.xlane.xlu0 %676
        %v678 = vsel %vm582, %v669, 0.0
        %679 = vadd.xlane.f32.xlu0 %v678
        %v680 = vpop.xlane.xlu0 %679
        %v681 = vsel %vm582, %v671, 0.0
        %682 = vadd.xlane.f32.xlu0 %v681
        %v683 = vpop.xlane.xlu0 %682
        %v684 = vrcp.pop %v674
        %v685 = vrcp.pop %v677
        %v686 = vrcp.pop %v680
        %v687 = vrcp.pop %v683
        %v688 = vmul.f32 %v665, %v684
        %v689 = vmul.f32 %v667, %v685
        %v690 = vmul.f32 %v669, %v686
        %v691 = vmul.f32 %v671, %v687
        %v692 = vpack.c.bf16 %v689, %v688
        %v693 = vpack.c.bf16 %v691, %v690
        %v695 = vsel %vm582, %v692, 0
        %v698 = vsel %vm582, %v693, 0
        %700 = vmatprep.subr.bf16.mxu0 0
        %701 = vmatpush1.bf16.msra.mxu0 0
        %702 = vmatprep.subr.bf16.mxu0 0
        %703 = vmatpush1.bf16.msra.mxu0 0
        %704 = vmatprep.subr.bf16.mxu0 0
        %705 = vmatpush1.bf16.msra.mxu0 0
        %706 = vmatprep.subr.bf16.mxu0 0
        %707 = vmatpush1.bf16.msra.mxu0 0
        %708 = vmatprep.subr.bf16.mxu0 0
        %709 = vmatpush1.bf16.msra.mxu0 0
        %710 = vmatprep.subr.bf16.mxu0 0
        %711 = vmatpush1.bf16.msra.mxu0 0
        %712 = vmatprep.subr.bf16.mxu0 0
        %713 = vmatpush1.bf16.msra.mxu0 %v564
        %714 = vmatprep.subr.bf16.mxu0 0
        %715 = vmatpush1.bf16.msra.mxu0 %v561
        %716 = vmatprep.subr.bf16.mxu0 0
        %717 = vmatpush2.bf16.msra.mxu0 0
        %718 = vmatprep.subr.bf16.mxu0 0
        %719 = vmatpush2.bf16.msra.mxu0 0
        %720 = vmatprep.subr.bf16.mxu0 0
        %721 = vmatpush2.bf16.msra.mxu0 0
        %722 = vmatprep.subr.bf16.mxu0 0
        %723 = vmatpush2.bf16.msra.mxu0 0
        %724 = vmatprep.subr.bf16.mxu0 0
        %725 = vmatpush2.bf16.msra.mxu0 0
        %726 = vmatprep.subr.bf16.mxu0 0
        %727 = vmatpush2.bf16.msra.mxu0 0
        %728 = vmatprep.subr.bf16.mxu0 0
        %729 = vmatpush2.bf16.msra.mxu0 0
        %730 = vmatprep.subr.bf16.mxu0 0
        %731 = vmatpush2.bf16.msra.mxu0 0
        %732 = vmatprep.mubr.bf16.mxu0 0
        %733 = vmatmul.mubr.bf16.gmra.mxu0 %v695
        %v734 = vpop.f32.mrf.mxu0
        %v735 = vadd.f32 0.0, %v734
        %v736 = vpop.f32.mrf.mxu0
        %v737 = vpop.f32.mrf.mxu0
        %v738 = vadd.f32 0.0, %v737
        %v739 = vpop.f32.mrf.mxu0
        %740 = vmatprep.mubr.bf16.mxu0 0
        %741 = vmatmul.mubr.bf16.gmra.mxu0 %v698
        %v742 = vpop.f32.mrf.mxu0
        %v743 = vadd.f32 0.0, %v742
        %v744 = vpop.f32.mrf.mxu0
        %v745 = vpop.f32.mrf.mxu0
        %v746 = vadd.f32 0.0, %v745
        %v747 = vpop.f32.mrf.mxu0
        %748 = vdwg.mxu0
        %749 = vst.msk [vmem:[#allocation2] sm:$0xff] %vm582, %v735
        %750 = vst.msk [vmem:[#allocation2 + $0x8] sm:$0xff] %vm582, %v738
        %751 = vst.msk [vmem:[#allocation2 + $0x10] sm:$0xff] %vm582, %v743
        %752 = vst.msk [vmem:[#allocation2 + $0x18] sm:$0xff] %vm582, %v746
        %755 = vrot.lane.b32.xlu0 %v559, 96
        %v756 = vpop.permute.xlu0 %755
        %757 = vrot.lane.b32.xlu0 %v562, 96
        %v758 = vpop.permute.xlu0 %757
        %761 = vrot.lane.b32.xlu0 %v560, 96
        %v762 = vpop.permute.xlu0 %761
        %763 = vrot.lane.b32.xlu0 %v563, 96
        %v764 = vpop.permute.xlu0 %763
        %v766 = vsel %vm582, %v756, 0
        %v769 = vsel %vm582, %v758, 0
        %v772 = vsel %vm582, %v762, 0
        %v775 = vsel %vm582, %v764, 0
        %777 = vmatprep.subr.bf16.mxu0 0
        %778 = vmatpush1.bf16.xpose.msra.mxu0 0
        %779 = vmatprep.subr.bf16.mxu0 0
        %780 = vmatpush1.bf16.xpose.msra.mxu0 0
        %781 = vmatprep.subr.bf16.mxu0 0
        %782 = vmatpush1.bf16.xpose.msra.mxu0 0
        %783 = vmatprep.subr.bf16.mxu0 0
        %784 = vmatpush1.bf16.xpose.msra.mxu0 0
        %785 = vmatprep.subr.bf16.mxu0 0
        %786 = vmatpush1.bf16.xpose.msra.mxu0 0
        %787 = vmatprep.subr.bf16.mxu0 0
        %788 = vmatpush1.bf16.xpose.msra.mxu0 0
        %789 = vmatprep.subr.bf16.mxu0 0
        %790 = vmatpush1.bf16.xpose.msra.mxu0 %v775
        %791 = vmatprep.subr.bf16.mxu0 0
        %792 = vmatpush1.bf16.xpose.msra.mxu0 %v772
        %793 = vmatprep.subr.bf16.mxu0 0
        %794 = vmatpush2.bf16.xpose.msra.mxu0 0
        %795 = vmatprep.subr.bf16.mxu0 0
        %796 = vmatpush2.bf16.xpose.msra.mxu0 0
        %797 = vmatprep.subr.bf16.mxu0 0
        %798 = vmatpush2.bf16.xpose.msra.mxu0 0
        %799 = vmatprep.subr.bf16.mxu0 0
        %800 = vmatpush2.bf16.xpose.msra.mxu0 0
        %801 = vmatprep.subr.bf16.mxu0 0
        %802 = vmatpush2.bf16.xpose.msra.mxu0 0
        %803 = vmatprep.subr.bf16.mxu0 0
        %804 = vmatpush2.bf16.xpose.msra.mxu0 0
        %805 = vmatprep.subr.bf16.mxu0 0
        %806 = vmatpush2.bf16.xpose.msra.mxu0 0
        %807 = vmatprep.subr.bf16.mxu0 0
        %808 = vmatpush2.bf16.xpose.msra.mxu0 0
        %809 = vmatprep.mubr.bf16.mxu0 0
        %810 = vmatmul.mubr.bf16.gmra.mxu0 %v766
        %v811 = vpop.f32.mrf.mxu0
        %v812 = vadd.f32 0.0, %v811
        %v813 = vpop.f32.mrf.mxu0
        %v814 = vpop.f32.mrf.mxu0
        %v815 = vadd.f32 0.0, %v814
        %v816 = vpop.f32.mrf.mxu0
        %817 = vmatprep.mubr.bf16.mxu0 0
        %818 = vmatmul.mubr.bf16.gmra.mxu0 %v769
        %v819 = vpop.f32.mrf.mxu0
        %v820 = vadd.f32 0.0, %v819
        %v821 = vpop.f32.mrf.mxu0
        %v822 = vpop.f32.mrf.mxu0
        %v823 = vadd.f32 0.0, %v822
        %v824 = vpop.f32.mrf.mxu0
        %825 = vdwg.mxu0
        %v826 = vsel %vm578, %v812, -1e+30
        %v827 = vsel %vm579, %v815, -1e+30
        %v828 = vsel %vm580, %v820, -1e+30
        %v829 = vsel %vm581, %v823, -1e+30
        %v830 = vsel %vm582, %v826, -inf
        %831 = vmax.xlane.f32.xlu0 %v830
        %v832 = vpop.xlane.xlu0 %831
        %v833 = vsel %vm582, %v827, -inf
        %834 = vmax.xlane.f32.xlu0 %v833
        %v835 = vpop.xlane.xlu0 %834
        %v836 = vsel %vm582, %v828, -inf
        %837 = vmax.xlane.f32.xlu0 %v836
        %v838 = vpop.xlane.xlu0 %837
        %v839 = vsel %vm582, %v829, -inf
        %840 = vmax.xlane.f32.xlu0 %v839
        %v841 = vpop.xlane.xlu0 %840
        %v842 = vsub.f32 %v826, %v832
        %v843 = vsub.f32 %v827, %v835
        %v844 = vsub.f32 %v828, %v838
        %v845 = vsub.f32 %v829, %v841
        %v846 = vmul.f32 %v842, 1.442695
        %v847 = vpow.pop %v846
        %v848 = vmul.f32 %v843, 1.442695
        %v849 = vpow.pop %v848
        %v850 = vmul.f32 %v844, 1.442695
        %v851 = vpow.pop %v850
        %v852 = vmul.f32 %v845, 1.442695
        %v853 = vpow.pop %v852
        %v854 = vsel %vm582, %v847, 0.0
        %855 = vadd.xlane.f32.xlu0 %v854
        %v856 = vpop.xlane.xlu0 %855
        %v857 = vsel %vm582, %v849, 0.0
        %858 = vadd.xlane.f32.xlu0 %v857
        %v859 = vpop.xlane.xlu0 %858
        %v860 = vsel %vm582, %v851, 0.0
        %861 = vadd.xlane.f32.xlu0 %v860
        %v862 = vpop.xlane.xlu0 %861
        %v863 = vsel %vm582, %v853, 0.0
        %864 = vadd.xlane.f32.xlu0 %v863
        %v865 = vpop.xlane.xlu0 %864
        %v866 = vrcp.pop %v856
        %v867 = vrcp.pop %v859
        %v868 = vrcp.pop %v862
        %v869 = vrcp.pop %v865
        %v870 = vmul.f32 %v847, %v866
        %v871 = vmul.f32 %v849, %v867
        %v872 = vmul.f32 %v851, %v868
        %v873 = vmul.f32 %v853, %v869
        %v874 = vpack.c.bf16 %v871, %v870
        %v875 = vpack.c.bf16 %v873, %v872
        %878 = vrot.lane.b32.xlu0 %v561, 96
        %v879 = vpop.permute.xlu0 %878
        %880 = vrot.lane.b32.xlu0 %v564, 96
        %v881 = vpop.permute.xlu0 %880
        %v885 = vsel %vm582, %v874, 0
        %v888 = vsel %vm582, %v875, 0
        %890 = vmatprep.subr.bf16.mxu0 0
        %891 = vmatpush1.bf16.msra.mxu0 0
        %892 = vmatprep.subr.bf16.mxu0 0
        %893 = vmatpush1.bf16.msra.mxu0 0
        %894 = vmatprep.subr.bf16.mxu0 0
        %895 = vmatpush1.bf16.msra.mxu0 0
        %896 = vmatprep.subr.bf16.mxu0 0
        %897 = vmatpush1.bf16.msra.mxu0 0
        %898 = vmatprep.subr.bf16.mxu0 0
        %899 = vmatpush1.bf16.msra.mxu0 0
        %900 = vmatprep.subr.bf16.mxu0 0
        %901 = vmatpush1.bf16.msra.mxu0 0
        %902 = vmatprep.subr.bf16.mxu0 0
        %903 = vmatpush1.bf16.msra.mxu0 %v881
        %904 = vmatprep.subr.bf16.mxu0 0
        %905 = vmatpush1.bf16.msra.mxu0 %v879
        %906 = vmatprep.subr.bf16.mxu0 0
        %907 = vmatpush2.bf16.msra.mxu0 0
        %908 = vmatprep.subr.bf16.mxu0 0
        %909 = vmatpush2.bf16.msra.mxu0 0
        %910 = vmatprep.subr.bf16.mxu0 0
        %911 = vmatpush2.bf16.msra.mxu0 0
        %912 = vmatprep.subr.bf16.mxu0 0
        %913 = vmatpush2.bf16.msra.mxu0 0
        %914 = vmatprep.subr.bf16.mxu0 0
        %915 = vmatpush2.bf16.msra.mxu0 0
        %916 = vmatprep.subr.bf16.mxu0 0
        %917 = vmatpush2.bf16.msra.mxu0 0
        %918 = vmatprep.subr.bf16.mxu0 0
        %919 = vmatpush2.bf16.msra.mxu0 0
        %920 = vmatprep.subr.bf16.mxu0 0
        %921 = vmatpush2.bf16.msra.mxu0 0
        %922 = vmatprep.mubr.bf16.mxu0 0
        %923 = vmatmul.mubr.bf16.gmra.mxu0 %v885
        %v924 = vpop.f32.mrf.mxu0
        %v925 = vadd.f32 0.0, %v924
        %v926 = vpop.f32.mrf.mxu0
        %v927 = vpop.f32.mrf.mxu0
        %v928 = vadd.f32 0.0, %v927
        %v929 = vpop.f32.mrf.mxu0
        %930 = vmatprep.mubr.bf16.mxu0 0
        %931 = vmatmul.mubr.bf16.gmra.mxu0 %v888
        %v932 = vpop.f32.mrf.mxu0
        %v933 = vadd.f32 0.0, %v932
        %v934 = vpop.f32.mrf.mxu0
        %v935 = vpop.f32.mrf.mxu0
        %v936 = vadd.f32 0.0, %v935
        %v937 = vpop.f32.mrf.mxu0
        %938 = vdwg.mxu0
        %943 = vrot.lane.b32.xlu0 %v925, 32
        %v944 = vpop.permute.xlu0 %943
        %945 = vrot.lane.b32.xlu0 %v928, 32
        %v946 = vpop.permute.xlu0 %945
        %947 = vrot.lane.b32.xlu0 %v933, 32
        %v948 = vpop.permute.xlu0 %947
        %949 = vrot.lane.b32.xlu0 %v936, 32
        %v950 = vpop.permute.xlu0 %949
        %vm955 = vcmask 523520
        %956 = vst.msk [vmem:[#allocation2] sm:$0xff] %vm955, %v944
        %957 = vst.msk [vmem:[#allocation2 + $0x8] sm:$0xff] %vm955, %v946
        %958 = vst.msk [vmem:[#allocation2 + $0x10] sm:$0xff] %vm955, %v948
        %959 = vst.msk [vmem:[#allocation2 + $0x18] sm:$0xff] %vm955, %v950
        %960 = vrot.lane.b32.xlu0 %v559, 64
        %v961 = vpop.permute.xlu0 %960
        %962 = vrot.lane.b32.xlu0 %v562, 64
        %v963 = vpop.permute.xlu0 %962
        %964 = vrot.lane.b32.xlu0 %v560, 64
        %v965 = vpop.permute.xlu0 %964
        %966 = vrot.lane.b32.xlu0 %v563, 64
        %v967 = vpop.permute.xlu0 %966
        %v969 = vsel %vm582, %v961, 0
        %v972 = vsel %vm582, %v963, 0
        %v975 = vsel %vm582, %v965, 0
        %v978 = vsel %vm582, %v967, 0
        %980 = vmatprep.subr.bf16.mxu0 0
        %981 = vmatpush1.bf16.xpose.msra.mxu0 0
        %982 = vmatprep.subr.bf16.mxu0 0
        %983 = vmatpush1.bf16.xpose.msra.mxu0 0
        %984 = vmatprep.subr.bf16.mxu0 0
        %985 = vmatpush1.bf16.xpose.msra.mxu0 0
        %986 = vmatprep.subr.bf16.mxu0 0
        %987 = vmatpush1.bf16.xpose.msra.mxu0 0
        %988 = vmatprep.subr.bf16.mxu0 0
        %989 = vmatpush1.bf16.xpose.msra.mxu0 0
        %990 = vmatprep.subr.bf16.mxu0 0
        %991 = vmatpush1.bf16.xpose.msra.mxu0 0
        %992 = vmatprep.subr.bf16.mxu0 0
        %993 = vmatpush1.bf16.xpose.msra.mxu0 %v978
        %994 = vmatprep.subr.bf16.mxu0 0
        %995 = vmatpush1.bf16.xpose.msra.mxu0 %v975
        %996 = vmatprep.subr.bf16.mxu0 0
        %997 = vmatpush2.bf16.xpose.msra.mxu0 0
        %998 = vmatprep.subr.bf16.mxu0 0
        %999 = vmatpush2.bf16.xpose.msra.mxu0 0
        %1000 = vmatprep.subr.bf16.mxu0 0
        %1001 = vmatpush2.bf16.xpose.msra.mxu0 0
        %1002 = vmatprep.subr.bf16.mxu0 0
        %1003 = vmatpush2.bf16.xpose.msra.mxu0 0
        %1004 = vmatprep.subr.bf16.mxu0 0
        %1005 = vmatpush2.bf16.xpose.msra.mxu0 0
        %1006 = vmatprep.subr.bf16.mxu0 0
        %1007 = vmatpush2.bf16.xpose.msra.mxu0 0
        %1008 = vmatprep.subr.bf16.mxu0 0
        %1009 = vmatpush2.bf16.xpose.msra.mxu0 0
        %1010 = vmatprep.subr.bf16.mxu0 0
        %1011 = vmatpush2.bf16.xpose.msra.mxu0 0
        %1012 = vmatprep.mubr.bf16.mxu0 0
        %1013 = vmatmul.mubr.bf16.gmra.mxu0 %v969
        %v1014 = vpop.f32.mrf.mxu0
        %v1015 = vadd.f32 0.0, %v1014
        %v1016 = vpop.f32.mrf.mxu0
        %v1017 = vpop.f32.mrf.mxu0
        %v1018 = vadd.f32 0.0, %v1017
        %v1019 = vpop.f32.mrf.mxu0
        %1020 = vmatprep.mubr.bf16.mxu0 0
        %1021 = vmatmul.mubr.bf16.gmra.mxu0 %v972
        %v1022 = vpop.f32.mrf.mxu0
        %v1023 = vadd.f32 0.0, %v1022
        %v1024 = vpop.f32.mrf.mxu0
        %v1025 = vpop.f32.mrf.mxu0
        %v1026 = vadd.f32 0.0, %v1025
        %v1027 = vpop.f32.mrf.mxu0
        %1028 = vdwg.mxu0
        %v1029 = vsel %vm578, %v1015, -1e+30
        %v1030 = vsel %vm579, %v1018, -1e+30
        %v1031 = vsel %vm580, %v1023, -1e+30
        %v1032 = vsel %vm581, %v1026, -1e+30
        %v1033 = vsel %vm582, %v1029, -inf
        %1034 = vmax.xlane.f32.xlu0 %v1033
        %v1035 = vpop.xlane.xlu0 %1034
        %v1036 = vsel %vm582, %v1030, -inf
        %1037 = vmax.xlane.f32.xlu0 %v1036
        %v1038 = vpop.xlane.xlu0 %1037
        %v1039 = vsel %vm582, %v1031, -inf
        %1040 = vmax.xlane.f32.xlu0 %v1039
        %v1041 = vpop.xlane.xlu0 %1040
        %v1042 = vsel %vm582, %v1032, -inf
        %1043 = vmax.xlane.f32.xlu0 %v1042
        %v1044 = vpop.xlane.xlu0 %1043
        %v1045 = vsub.f32 %v1029, %v1035
        %v1046 = vsub.f32 %v1030, %v1038
        %v1047 = vsub.f32 %v1031, %v1041
        %v1048 = vsub.f32 %v1032, %v1044
        %v1049 = vmul.f32 %v1045, 1.442695
        %v1050 = vpow.pop %v1049
        %v1051 = vmul.f32 %v1046, 1.442695
        %v1052 = vpow.pop %v1051
        %v1053 = vmul.f32 %v1047, 1.442695
        %v1054 = vpow.pop %v1053
        %v1055 = vmul.f32 %v1048, 1.442695
        %v1056 = vpow.pop %v1055
        %v1057 = vsel %vm582, %v1050, 0.0
        %1058 = vadd.xlane.f32.xlu0 %v1057
        %v1059 = vpop.xlane.xlu0 %1058
        %v1060 = vsel %vm582, %v1052, 0.0
        %1061 = vadd.xlane.f32.xlu0 %v1060
        %v1062 = vpop.xlane.xlu0 %1061
        %v1063 = vsel %vm582, %v1054, 0.0
        %1064 = vadd.xlane.f32.xlu0 %v1063
        %v1065 = vpop.xlane.xlu0 %1064
        %v1066 = vsel %vm582, %v1056, 0.0
        %1067 = vadd.xlane.f32.xlu0 %v1066
        %v1068 = vpop.xlane.xlu0 %1067
        %v1069 = vrcp.pop %v1059
        %v1070 = vrcp.pop %v1062
        %v1071 = vrcp.pop %v1065
        %v1072 = vrcp.pop %v1068
        %v1073 = vmul.f32 %v1050, %v1069
        %v1074 = vmul.f32 %v1052, %v1070
        %v1075 = vmul.f32 %v1054, %v1071
        %v1076 = vmul.f32 %v1056, %v1072
        %v1077 = vpack.c.bf16 %v1074, %v1073
        %v1078 = vpack.c.bf16 %v1076, %v1075
        %1079 = vrot.lane.b32.xlu0 %v561, 64
        %v1080 = vpop.permute.xlu0 %1079
        %1081 = vrot.lane.b32.xlu0 %v564, 64
        %v1082 = vpop.permute.xlu0 %1081
        %v1086 = vsel %vm582, %v1077, 0
        %v1089 = vsel %vm582, %v1078, 0
        %1091 = vmatprep.subr.bf16.mxu0 0
        %1092 = vmatpush1.bf16.msra.mxu0 0
        %1093 = vmatprep.subr.bf16.mxu0 0
        %1094 = vmatpush1.bf16.msra.mxu0 0
        %1095 = vmatprep.subr.bf16.mxu0 0
        %1096 = vmatpush1.bf16.msra.mxu0 0
        %1097 = vmatprep.subr.bf16.mxu0 0
        %1098 = vmatpush1.bf16.msra.mxu0 0
        %1099 = vmatprep.subr.bf16.mxu0 0
        %1100 = vmatpush1.bf16.msra.mxu0 0
        %1101 = vmatprep.subr.bf16.mxu0 0
        %1102 = vmatpush1.bf16.msra.mxu0 0
        %1103 = vmatprep.subr.bf16.mxu0 0
        %1104 = vmatpush1.bf16.msra.mxu0 %v1082
        %1105 = vmatprep.subr.bf16.mxu0 0
        %1106 = vmatpush1.bf16.msra.mxu0 %v1080
        %1107 = vmatprep.subr.bf16.mxu0 0
        %1108 = vmatpush2.bf16.msra.mxu0 0
        %1109 = vmatprep.subr.bf16.mxu0 0
        %1110 = vmatpush2.bf16.msra.mxu0 0
        %1111 = vmatprep.subr.bf16.mxu0 0
        %1112 = vmatpush2.bf16.msra.mxu0 0
        %1113 = vmatprep.subr.bf16.mxu0 0
        %1114 = vmatpush2.bf16.msra.mxu0 0
        %1115 = vmatprep.subr.bf16.mxu0 0
        %1116 = vmatpush2.bf16.msra.mxu0 0
        %1117 = vmatprep.subr.bf16.mxu0 0
        %1118 = vmatpush2.bf16.msra.mxu0 0
        %1119 = vmatprep.subr.bf16.mxu0 0
        %1120 = vmatpush2.bf16.msra.mxu0 0
        %1121 = vmatprep.subr.bf16.mxu0 0
        %1122 = vmatpush2.bf16.msra.mxu0 0
        %1123 = vmatprep.mubr.bf16.mxu0 0
        %1124 = vmatmul.mubr.bf16.gmra.mxu0 %v1086
        %v1125 = vpop.f32.mrf.mxu0
        %v1126 = vadd.f32 0.0, %v1125
        %v1127 = vpop.f32.mrf.mxu0
        %v1128 = vpop.f32.mrf.mxu0
        %v1129 = vadd.f32 0.0, %v1128
        %v1130 = vpop.f32.mrf.mxu0
        %1131 = vmatprep.mubr.bf16.mxu0 0
        %1132 = vmatmul.mubr.bf16.gmra.mxu0 %v1089
        %v1133 = vpop.f32.mrf.mxu0
        %v1134 = vadd.f32 0.0, %v1133
        %v1135 = vpop.f32.mrf.mxu0
        %v1136 = vpop.f32.mrf.mxu0
        %v1137 = vadd.f32 0.0, %v1136
        %v1138 = vpop.f32.mrf.mxu0
        %1139 = vdwg.mxu0
        %1144 = vrot.lane.b32.xlu0 %v1126, 64
        %v1145 = vpop.permute.xlu0 %1144
        %1146 = vrot.lane.b32.xlu0 %v1129, 64
        %v1147 = vpop.permute.xlu0 %1146
        %1148 = vrot.lane.b32.xlu0 %v1134, 64
        %v1149 = vpop.permute.xlu0 %1148
        %1150 = vrot.lane.b32.xlu0 %v1137, 64
        %v1151 = vpop.permute.xlu0 %1150
        %vm1156 = vcmask 785920
        %1157 = vst.msk [vmem:[#allocation2] sm:$0xff] %vm1156, %v1145
        %1158 = vst.msk [vmem:[#allocation2 + $0x8] sm:$0xff] %vm1156, %v1147
        %1159 = vst.msk [vmem:[#allocation2 + $0x10] sm:$0xff] %vm1156, %v1149
        %1160 = vst.msk [vmem:[#allocation2 + $0x18] sm:$0xff] %vm1156, %v1151
        %1161 = vrot.lane.b32.xlu0 %v559, 32
        %v1162 = vpop.permute.xlu0 %1161
        %1163 = vrot.lane.b32.xlu0 %v562, 32
        %v1164 = vpop.permute.xlu0 %1163
        %1165 = vrot.lane.b32.xlu0 %v560, 32
        %v1166 = vpop.permute.xlu0 %1165
        %1167 = vrot.lane.b32.xlu0 %v563, 32
        %v1168 = vpop.permute.xlu0 %1167
        %v1170 = vsel %vm582, %v1162, 0
        %v1173 = vsel %vm582, %v1164, 0
        %v1176 = vsel %vm582, %v1166, 0
        %v1179 = vsel %vm582, %v1168, 0
        %1181 = vmatprep.subr.bf16.mxu0 0
        %1182 = vmatpush1.bf16.xpose.msra.mxu0 0
        %1183 = vmatprep.subr.bf16.mxu0 0
        %1184 = vmatpush1.bf16.xpose.msra.mxu0 0
        %1185 = vmatprep.subr.bf16.mxu0 0
        %1186 = vmatpush1.bf16.xpose.msra.mxu0 0
        %1187 = vmatprep.subr.bf16.mxu0 0
        %1188 = vmatpush1.bf16.xpose.msra.mxu0 0
        %1189 = vmatprep.subr.bf16.mxu0 0
        %1190 = vmatpush1.bf16.xpose.msra.mxu0 0
        %1191 = vmatprep.subr.bf16.mxu0 0
        %1192 = vmatpush1.bf16.xpose.msra.mxu0 0
        %1193 = vmatprep.subr.bf16.mxu0 0
        %1194 = vmatpush1.bf16.xpose.msra.mxu0 %v1179
        %1195 = vmatprep.subr.bf16.mxu0 0
        %1196 = vmatpush1.bf16.xpose.msra.mxu0 %v1176
        %1197 = vmatprep.subr.bf16.mxu0 0
        %1198 = vmatpush2.bf16.xpose.msra.mxu0 0
        %1199 = vmatprep.subr.bf16.mxu0 0
        %1200 = vmatpush2.bf16.xpose.msra.mxu0 0
        %1201 = vmatprep.subr.bf16.mxu0 0
        %1202 = vmatpush2.bf16.xpose.msra.mxu0 0
        %1203 = vmatprep.subr.bf16.mxu0 0
        %1204 = vmatpush2.bf16.xpose.msra.mxu0 0
        %1205 = vmatprep.subr.bf16.mxu0 0
        %1206 = vmatpush2.bf16.xpose.msra.mxu0 0
        %1207 = vmatprep.subr.bf16.mxu0 0
        %1208 = vmatpush2.bf16.xpose.msra.mxu0 0
        %1209 = vmatprep.subr.bf16.mxu0 0
        %1210 = vmatpush2.bf16.xpose.msra.mxu0 0
        %1211 = vmatprep.subr.bf16.mxu0 0
        %1212 = vmatpush2.bf16.xpose.msra.mxu0 0
        %1213 = vmatprep.mubr.bf16.mxu0 0
        %1214 = vmatmul.mubr.bf16.gmra.mxu0 %v1170
        %v1215 = vpop.f32.mrf.mxu0
        %v1216 = vadd.f32 0.0, %v1215
        %v1217 = vpop.f32.mrf.mxu0
        %v1218 = vpop.f32.mrf.mxu0
        %v1219 = vadd.f32 0.0, %v1218
        %v1220 = vpop.f32.mrf.mxu0
        %1221 = vmatprep.mubr.bf16.mxu0 0
        %1222 = vmatmul.mubr.bf16.gmra.mxu0 %v1173
        %v1223 = vpop.f32.mrf.mxu0
        %v1224 = vadd.f32 0.0, %v1223
        %v1225 = vpop.f32.mrf.mxu0
        %v1226 = vpop.f32.mrf.mxu0
        %v1227 = vadd.f32 0.0, %v1226
        %v1228 = vpop.f32.mrf.mxu0
        %1229 = vdwg.mxu0
        %v1230 = vsel %vm578, %v1216, -1e+30
        %v1231 = vsel %vm579, %v1219, -1e+30
        %v1232 = vsel %vm580, %v1224, -1e+30
        %v1233 = vsel %vm581, %v1227, -1e+30
        %v1234 = vsel %vm582, %v1230, -inf
        %1235 = vmax.xlane.f32.xlu0 %v1234
        %v1236 = vpop.xlane.xlu0 %1235
        %v1237 = vsel %vm582, %v1231, -inf
        %1238 = vmax.xlane.f32.xlu0 %v1237
        %v1239 = vpop.xlane.xlu0 %1238
        %v1240 = vsel %vm582, %v1232, -inf
        %1241 = vmax.xlane.f32.xlu0 %v1240
        %v1242 = vpop.xlane.xlu0 %1241
        %v1243 = vsel %vm582, %v1233, -inf
        %1244 = vmax.xlane.f32.xlu0 %v1243
        %v1245 = vpop.xlane.xlu0 %1244
        %v1246 = vsub.f32 %v1230, %v1236
        %v1247 = vsub.f32 %v1231, %v1239
        %v1248 = vsub.f32 %v1232, %v1242
        %v1249 = vsub.f32 %v1233, %v1245
        %v1250 = vmul.f32 %v1246, 1.442695
        %v1251 = vpow.pop %v1250
        %v1252 = vmul.f32 %v1247, 1.442695
        %v1253 = vpow.pop %v1252
        %v1254 = vmul.f32 %v1248, 1.442695
        %v1255 = vpow.pop %v1254
        %v1256 = vmul.f32 %v1249, 1.442695
        %v1257 = vpow.pop %v1256
        %v1258 = vsel %vm582, %v1251, 0.0
        %1259 = vadd.xlane.f32.xlu0 %v1258
        %v1260 = vpop.xlane.xlu0 %1259
        %v1261 = vsel %vm582, %v1253, 0.0
        %1262 = vadd.xlane.f32.xlu0 %v1261
        %v1263 = vpop.xlane.xlu0 %1262
        %v1264 = vsel %vm582, %v1255, 0.0
        %1265 = vadd.xlane.f32.xlu0 %v1264
        %v1266 = vpop.xlane.xlu0 %1265
        %v1267 = vsel %vm582, %v1257, 0.0
        %1268 = vadd.xlane.f32.xlu0 %v1267
        %v1269 = vpop.xlane.xlu0 %1268
        %v1270 = vrcp.pop %v1260
        %v1271 = vrcp.pop %v1263
        %v1272 = vrcp.pop %v1266
        %v1273 = vrcp.pop %v1269
        %v1274 = vmul.f32 %v1251, %v1270
        %v1275 = vmul.f32 %v1253, %v1271
        %v1276 = vmul.f32 %v1255, %v1272
        %v1277 = vmul.f32 %v1257, %v1273
        %v1278 = vpack.c.bf16 %v1275, %v1274
        %v1279 = vpack.c.bf16 %v1277, %v1276
        %1280 = vrot.lane.b32.xlu0 %v561, 32
        %v1281 = vpop.permute.xlu0 %1280
        %1282 = vrot.lane.b32.xlu0 %v564, 32
        %v1283 = vpop.permute.xlu0 %1282
        %v1287 = vsel %vm582, %v1278, 0
        %v1290 = vsel %vm582, %v1279, 0
        %1292 = vmatprep.subr.bf16.mxu0 0
        %1293 = vmatpush1.bf16.msra.mxu0 0
        %1294 = vmatprep.subr.bf16.mxu0 0
        %1295 = vmatpush1.bf16.msra.mxu0 0
        %1296 = vmatprep.subr.bf16.mxu0 0
        %1297 = vmatpush1.bf16.msra.mxu0 0
        %1298 = vmatprep.subr.bf16.mxu0 0
        %1299 = vmatpush1.bf16.msra.mxu0 0
        %1300 = vmatprep.subr.bf16.mxu0 0
        %1301 = vmatpush1.bf16.msra.mxu0 0
        %1302 = vmatprep.subr.bf16.mxu0 0
        %1303 = vmatpush1.bf16.msra.mxu0 0
        %1304 = vmatprep.subr.bf16.mxu0 0
        %1305 = vmatpush1.bf16.msra.mxu0 %v1283
        %1306 = vmatprep.subr.bf16.mxu0 0
        %1307 = vmatpush1.bf16.msra.mxu0 %v1281
        %1308 = vmatprep.subr.bf16.mxu0 0
        %1309 = vmatpush2.bf16.msra.mxu0 0
        %1310 = vmatprep.subr.bf16.mxu0 0
        %1311 = vmatpush2.bf16.msra.mxu0 0
        %1312 = vmatprep.subr.bf16.mxu0 0
        %1313 = vmatpush2.bf16.msra.mxu0 0
        %1314 = vmatprep.subr.bf16.mxu0 0
        %1315 = vmatpush2.bf16.msra.mxu0 0
        %1316 = vmatprep.subr.bf16.mxu0 0
        %1317 = vmatpush2.bf16.msra.mxu0 0
        %1318 = vmatprep.subr.bf16.mxu0 0
        %1319 = vmatpush2.bf16.msra.mxu0 0
        %1320 = vmatprep.subr.bf16.mxu0 0
        %1321 = vmatpush2.bf16.msra.mxu0 0
        %1322 = vmatprep.subr.bf16.mxu0 0
        %1323 = vmatpush2.bf16.msra.mxu0 0
        %1324 = vmatprep.mubr.bf16.mxu0 0
        %1325 = vmatmul.mubr.bf16.gmra.mxu0 %v1287
        %v1326 = vpop.f32.mrf.mxu0
        %v1327 = vadd.f32 0.0, %v1326
        %v1328 = vpop.f32.mrf.mxu0
        %v1329 = vpop.f32.mrf.mxu0
        %v1330 = vadd.f32 0.0, %v1329
        %v1331 = vpop.f32.mrf.mxu0
        %1332 = vmatprep.mubr.bf16.mxu0 0
        %1333 = vmatmul.mubr.bf16.gmra.mxu0 %v1290
        %v1334 = vpop.f32.mrf.mxu0
        %v1335 = vadd.f32 0.0, %v1334
        %v1336 = vpop.f32.mrf.mxu0
        %v1337 = vpop.f32.mrf.mxu0
        %v1338 = vadd.f32 0.0, %v1337
        %v1339 = vpop.f32.mrf.mxu0
        %1340 = vdwg.mxu0
        %1345 = vrot.lane.b32.xlu0 %v1327, 96
        %v1346 = vpop.permute.xlu0 %1345
        %1347 = vrot.lane.b32.xlu0 %v1330, 96
        %v1348 = vpop.permute.xlu0 %1347
        %1349 = vrot.lane.b32.xlu0 %v1335, 96
        %v1350 = vpop.permute.xlu0 %1349
        %1351 = vrot.lane.b32.xlu0 %v1338, 96
        %v1352 = vpop.permute.xlu0 %1351
        %vm1357 = vcmask 1048320
        %1358 = vst.msk [vmem:[#allocation2] sm:$0xff] %vm1357, %v1346
        %1359 = vst.msk [vmem:[#allocation2 + $0x8] sm:$0xff] %vm1357, %v1348
        %1360 = vst.msk [vmem:[#allocation2 + $0x10] sm:$0xff] %vm1357, %v1350
        %1361 = vst.msk [vmem:[#allocation2 + $0x18] sm:$0xff] %vm1357, %v1352
        %v1363 = vsel %vm582, %v565, 0
        %v1366 = vsel %vm582, %v568, 0
        %v1369 = vsel %vm582, %v566, 0
        %v1372 = vsel %vm582, %v569, 0
        %1374 = vmatprep.subr.bf16.mxu0 0
        %1375 = vmatpush1.bf16.xpose.msra.mxu0 0
        %1376 = vmatprep.subr.bf16.mxu0 0
        %1377 = vmatpush1.bf16.xpose.msra.mxu0 0
        %1378 = vmatprep.subr.bf16.mxu0 0
        %1379 = vmatpush1.bf16.xpose.msra.mxu0 0
        %1380 = vmatprep.subr.bf16.mxu0 0
        %1381 = vmatpush1.bf16.xpose.msra.mxu0 0
        %1382 = vmatprep.subr.bf16.mxu0 0
        %1383 = vmatpush1.bf16.xpose.msra.mxu0 0
        %1384 = vmatprep.subr.bf16.mxu0 0
        %1385 = vmatpush1.bf16.xpose.msra.mxu0 0
        %1386 = vmatprep.subr.bf16.mxu0 0
        %1387 = vmatpush1.bf16.xpose.msra.mxu0 %v1372
        %1388 = vmatprep.subr.bf16.mxu0 0
        %1389 = vmatpush1.bf16.xpose.msra.mxu0 %v1369
        %1390 = vmatprep.subr.bf16.mxu0 0
        %1391 = vmatpush2.bf16.xpose.msra.mxu0 0
        %1392 = vmatprep.subr.bf16.mxu0 0
        %1393 = vmatpush2.bf16.xpose.msra.mxu0 0
        %1394 = vmatprep.subr.bf16.mxu0 0
        %1395 = vmatpush2.bf16.xpose.msra.mxu0 0
        %1396 = vmatprep.subr.bf16.mxu0 0
        %1397 = vmatpush2.bf16.xpose.msra.mxu0 0
        %1398 = vmatprep.subr.bf16.mxu0 0
        %1399 = vmatpush2.bf16.xpose.msra.mxu0 0
        %1400 = vmatprep.subr.bf16.mxu0 0
        %1401 = vmatpush2.bf16.xpose.msra.mxu0 0
        %1402 = vmatprep.subr.bf16.mxu0 0
        %1403 = vmatpush2.bf16.xpose.msra.mxu0 0
        %1404 = vmatprep.subr.bf16.mxu0 0
        %1405 = vmatpush2.bf16.xpose.msra.mxu0 0
        %1406 = vmatprep.mubr.bf16.mxu0 0
        %1407 = vmatmul.mubr.bf16.gmra.mxu0 %v1363
        %v1408 = vpop.f32.mrf.mxu0
        %v1409 = vadd.f32 0.0, %v1408
        %v1410 = vpop.f32.mrf.mxu0
        %v1411 = vpop.f32.mrf.mxu0
        %v1412 = vadd.f32 0.0, %v1411
        %v1413 = vpop.f32.mrf.mxu0
        %1414 = vmatprep.mubr.bf16.mxu0 0
        %1415 = vmatmul.mubr.bf16.gmra.mxu0 %v1366
        %v1416 = vpop.f32.mrf.mxu0
        %v1417 = vadd.f32 0.0, %v1416
        %v1418 = vpop.f32.mrf.mxu0
        %v1419 = vpop.f32.mrf.mxu0
        %v1420 = vadd.f32 0.0, %v1419
        %v1421 = vpop.f32.mrf.mxu0
        %1422 = vdwg.mxu0
        %v1423 = vsel %vm578, %v1409, -1e+30
        %v1424 = vsel %vm579, %v1412, -1e+30
        %v1425 = vsel %vm580, %v1417, -1e+30
        %v1426 = vsel %vm581, %v1420, -1e+30
        %v1427 = vsel %vm582, %v1423, -inf
        %1428 = vmax.xlane.f32.xlu0 %v1427
        %v1429 = vpop.xlane.xlu0 %1428
        %v1430 = vsel %vm582, %v1424, -inf
        %1431 = vmax.xlane.f32.xlu0 %v1430
        %v1432 = vpop.xlane.xlu0 %1431
        %v1433 = vsel %vm582, %v1425, -inf
        %1434 = vmax.xlane.f32.xlu0 %v1433
        %v1435 = vpop.xlane.xlu0 %1434
        %v1436 = vsel %vm582, %v1426, -inf
        %1437 = vmax.xlane.f32.xlu0 %v1436
        %v1438 = vpop.xlane.xlu0 %1437
        %v1439 = vsub.f32 %v1423, %v1429
        %v1440 = vsub.f32 %v1424, %v1432
        %v1441 = vsub.f32 %v1425, %v1435
        %v1442 = vsub.f32 %v1426, %v1438
        %v1443 = vmul.f32 %v1439, 1.442695
        %v1444 = vpow.pop %v1443
        %v1445 = vmul.f32 %v1440, 1.442695
        %v1446 = vpow.pop %v1445
        %v1447 = vmul.f32 %v1441, 1.442695
        %v1448 = vpow.pop %v1447
        %v1449 = vmul.f32 %v1442, 1.442695
        %v1450 = vpow.pop %v1449
        %v1451 = vsel %vm582, %v1444, 0.0
        %1452 = vadd.xlane.f32.xlu0 %v1451
        %v1453 = vpop.xlane.xlu0 %1452
        %v1454 = vsel %vm582, %v1446, 0.0
        %1455 = vadd.xlane.f32.xlu0 %v1454
        %v1456 = vpop.xlane.xlu0 %1455
        %v1457 = vsel %vm582, %v1448, 0.0
        %1458 = vadd.xlane.f32.xlu0 %v1457
        %v1459 = vpop.xlane.xlu0 %1458
        %v1460 = vsel %vm582, %v1450, 0.0
        %1461 = vadd.xlane.f32.xlu0 %v1460
        %v1462 = vpop.xlane.xlu0 %1461
        %v1463 = vrcp.pop %v1453
        %v1464 = vrcp.pop %v1456
        %v1465 = vrcp.pop %v1459
        %v1466 = vrcp.pop %v1462
        %v1467 = vmul.f32 %v1444, %v1463
        %v1468 = vmul.f32 %v1446, %v1464
        %v1469 = vmul.f32 %v1448, %v1465
        %v1470 = vmul.f32 %v1450, %v1466
        %v1471 = vpack.c.bf16 %v1468, %v1467
        %v1472 = vpack.c.bf16 %v1470, %v1469
        %v1474 = vsel %vm582, %v1471, 0
        %v1477 = vsel %vm582, %v1472, 0
        %1479 = vmatprep.subr.bf16.mxu0 0
        %1480 = vmatpush1.bf16.msra.mxu0 0
        %1481 = vmatprep.subr.bf16.mxu0 0
        %1482 = vmatpush1.bf16.msra.mxu0 0
        %1483 = vmatprep.subr.bf16.mxu0 0
        %1484 = vmatpush1.bf16.msra.mxu0 0
        %1485 = vmatprep.subr.bf16.mxu0 0
        %1486 = vmatpush1.bf16.msra.mxu0 0
        %1487 = vmatprep.subr.bf16.mxu0 0
        %1488 = vmatpush1.bf16.msra.mxu0 0
        %1489 = vmatprep.subr.bf16.mxu0 0
        %1490 = vmatpush1.bf16.msra.mxu0 0
        %1491 = vmatprep.subr.bf16.mxu0 0
        %1492 = vmatpush1.bf16.msra.mxu0 %v570
        %1493 = vmatprep.subr.bf16.mxu0 0
        %1494 = vmatpush1.bf16.msra.mxu0 %v567
        %1495 = vmatprep.subr.bf16.mxu0 0
        %1496 = vmatpush2.bf16.msra.mxu0 0
        %1497 = vmatprep.subr.bf16.mxu0 0
        %1498 = vmatpush2.bf16.msra.mxu0 0
        %1499 = vmatprep.subr.bf16.mxu0 0
        %1500 = vmatpush2.bf16.msra.mxu0 0
        %1501 = vmatprep.subr.bf16.mxu0 0
        %1502 = vmatpush2.bf16.msra.mxu0 0
        %1503 = vmatprep.subr.bf16.mxu0 0
        %1504 = vmatpush2.bf16.msra.mxu0 0
        %1505 = vmatprep.subr.bf16.mxu0 0
        %1506 = vmatpush2.bf16.msra.mxu0 0
        %1507 = vmatprep.subr.bf16.mxu0 0
        %1508 = vmatpush2.bf16.msra.mxu0 0
        %1509 = vmatprep.subr.bf16.mxu0 0
        %1510 = vmatpush2.bf16.msra.mxu0 0
        %1511 = vmatprep.mubr.bf16.mxu0 0
        %1512 = vmatmul.mubr.bf16.gmra.mxu0 %v1474
        %v1513 = vpop.f32.mrf.mxu0
        %v1514 = vadd.f32 0.0, %v1513
        %v1515 = vpop.f32.mrf.mxu0
        %v1516 = vpop.f32.mrf.mxu0
        %v1517 = vadd.f32 0.0, %v1516
        %v1518 = vpop.f32.mrf.mxu0
        %1519 = vmatprep.mubr.bf16.mxu0 0
        %1520 = vmatmul.mubr.bf16.gmra.mxu0 %v1477
        %v1521 = vpop.f32.mrf.mxu0
        %v1522 = vadd.f32 0.0, %v1521
        %v1523 = vpop.f32.mrf.mxu0
        %v1524 = vpop.f32.mrf.mxu0
        %v1525 = vadd.f32 0.0, %v1524
        %v1526 = vpop.f32.mrf.mxu0
        %1527 = vdwg.mxu0
        %1528 = vst.msk [vmem:[#allocation2 + $0x20] sm:$0xff] %vm582, %v1514
        %1529 = vst.msk [vmem:[#allocation2 + $0x28] sm:$0xff] %vm582, %v1517
        %1530 = vst.msk [vmem:[#allocation2 + $0x30] sm:$0xff] %vm582, %v1522
        %1531 = vst.msk [vmem:[#allocation2 + $0x38] sm:$0xff] %vm582, %v1525
        %1534 = vrot.lane.b32.xlu0 %v565, 96
        %v1535 = vpop.permute.xlu0 %1534
        %1536 = vrot.lane.b32.xlu0 %v568, 96
        %v1537 = vpop.permute.xlu0 %1536
        %1540 = vrot.lane.b32.xlu0 %v566, 96
        %v1541 = vpop.permute.xlu0 %1540
        %1542 = vrot.lane.b32.xlu0 %v569, 96
        %v1543 = vpop.permute.xlu0 %1542
        %v1545 = vsel %vm582, %v1535, 0
        %v1548 = vsel %vm582, %v1537, 0
        %v1551 = vsel %vm582, %v1541, 0
        %v1554 = vsel %vm582, %v1543, 0
        %1556 = vmatprep.subr.bf16.mxu0 0
        %1557 = vmatpush1.bf16.xpose.msra.mxu0 0
        %1558 = vmatprep.subr.bf16.mxu0 0
        %1559 = vmatpush1.bf16.xpose.msra.mxu0 0
        %1560 = vmatprep.subr.bf16.mxu0 0
        %1561 = vmatpush1.bf16.xpose.msra.mxu0 0
        %1562 = vmatprep.subr.bf16.mxu0 0
        %1563 = vmatpush1.bf16.xpose.msra.mxu0 0
        %1564 = vmatprep.subr.bf16.mxu0 0
        %1565 = vmatpush1.bf16.xpose.msra.mxu0 0
        %1566 = vmatprep.subr.bf16.mxu0 0
        %1567 = vmatpush1.bf16.xpose.msra.mxu0 0
        %1568 = vmatprep.subr.bf16.mxu0 0
        %1569 = vmatpush1.bf16.xpose.msra.mxu0 %v1554
        %1570 = vmatprep.subr.bf16.mxu0 0
        %1571 = vmatpush1.bf16.xpose.msra.mxu0 %v1551
        %1572 = vmatprep.subr.bf16.mxu0 0
        %1573 = vmatpush2.bf16.xpose.msra.mxu0 0
        %1574 = vmatprep.subr.bf16.mxu0 0
        %1575 = vmatpush2.bf16.xpose.msra.mxu0 0
        %1576 = vmatprep.subr.bf16.mxu0 0
        %1577 = vmatpush2.bf16.xpose.msra.mxu0 0
        %1578 = vmatprep.subr.bf16.mxu0 0
        %1579 = vmatpush2.bf16.xpose.msra.mxu0 0
        %1580 = vmatprep.subr.bf16.mxu0 0
        %1581 = vmatpush2.bf16.xpose.msra.mxu0 0
        %1582 = vmatprep.subr.bf16.mxu0 0
        %1583 = vmatpush2.bf16.xpose.msra.mxu0 0
        %1584 = vmatprep.subr.bf16.mxu0 0
        %1585 = vmatpush2.bf16.xpose.msra.mxu0 0
        %1586 = vmatprep.subr.bf16.mxu0 0
        %1587 = vmatpush2.bf16.xpose.msra.mxu0 0
        %1588 = vmatprep.mubr.bf16.mxu0 0
        %1589 = vmatmul.mubr.bf16.gmra.mxu0 %v1545
        %v1590 = vpop.f32.mrf.mxu0
        %v1591 = vadd.f32 0.0, %v1590
        %v1592 = vpop.f32.mrf.mxu0
        %v1593 = vpop.f32.mrf.mxu0
        %v1594 = vadd.f32 0.0, %v1593
        %v1595 = vpop.f32.mrf.mxu0
        %1596 = vmatprep.mubr.bf16.mxu0 0
        %1597 = vmatmul.mubr.bf16.gmra.mxu0 %v1548
        %v1598 = vpop.f32.mrf.mxu0
        %v1599 = vadd.f32 0.0, %v1598
        %v1600 = vpop.f32.mrf.mxu0
        %v1601 = vpop.f32.mrf.mxu0
        %v1602 = vadd.f32 0.0, %v1601
        %v1603 = vpop.f32.mrf.mxu0
        %1604 = vdwg.mxu0
        %v1605 = vsel %vm578, %v1591, -1e+30
        %v1606 = vsel %vm579, %v1594, -1e+30
        %v1607 = vsel %vm580, %v1599, -1e+30
        %v1608 = vsel %vm581, %v1602, -1e+30
        %v1609 = vsel %vm582, %v1605, -inf
        %1610 = vmax.xlane.f32.xlu0 %v1609
        %v1611 = vpop.xlane.xlu0 %1610
        %v1612 = vsel %vm582, %v1606, -inf
        %1613 = vmax.xlane.f32.xlu0 %v1612
        %v1614 = vpop.xlane.xlu0 %1613
        %v1615 = vsel %vm582, %v1607, -inf
        %1616 = vmax.xlane.f32.xlu0 %v1615
        %v1617 = vpop.xlane.xlu0 %1616
        %v1618 = vsel %vm582, %v1608, -inf
        %1619 = vmax.xlane.f32.xlu0 %v1618
        %v1620 = vpop.xlane.xlu0 %1619
        %v1621 = vsub.f32 %v1605, %v1611
        %v1622 = vsub.f32 %v1606, %v1614
        %v1623 = vsub.f32 %v1607, %v1617
        %v1624 = vsub.f32 %v1608, %v1620
        %v1625 = vmul.f32 %v1621, 1.442695
        %v1626 = vpow.pop %v1625
        %v1627 = vmul.f32 %v1622, 1.442695
        %v1628 = vpow.pop %v1627
        %v1629 = vmul.f32 %v1623, 1.442695
        %v1630 = vpow.pop %v1629
        %v1631 = vmul.f32 %v1624, 1.442695
        %v1632 = vpow.pop %v1631
        %v1633 = vsel %vm582, %v1626, 0.0
        %1634 = vadd.xlane.f32.xlu0 %v1633
        %v1635 = vpop.xlane.xlu0 %1634
        %v1636 = vsel %vm582, %v1628, 0.0
        %1637 = vadd.xlane.f32.xlu0 %v1636
        %v1638 = vpop.xlane.xlu0 %1637
        %v1639 = vsel %vm582, %v1630, 0.0
        %1640 = vadd.xlane.f32.xlu0 %v1639
        %v1641 = vpop.xlane.xlu0 %1640
        %v1642 = vsel %vm582, %v1632, 0.0
        %1643 = vadd.xlane.f32.xlu0 %v1642
        %v1644 = vpop.xlane.xlu0 %1643
        %v1645 = vrcp.pop %v1635
        %v1646 = vrcp.pop %v1638
        %v1647 = vrcp.pop %v1641
        %v1648 = vrcp.pop %v1644
        %v1649 = vmul.f32 %v1626, %v1645
        %v1650 = vmul.f32 %v1628, %v1646
        %v1651 = vmul.f32 %v1630, %v1647
        %v1652 = vmul.f32 %v1632, %v1648
        %v1653 = vpack.c.bf16 %v1650, %v1649
        %v1654 = vpack.c.bf16 %v1652, %v1651
        %1657 = vrot.lane.b32.xlu0 %v567, 96
        %v1658 = vpop.permute.xlu0 %1657
        %1659 = vrot.lane.b32.xlu0 %v570, 96
        %v1660 = vpop.permute.xlu0 %1659
        %v1664 = vsel %vm582, %v1653, 0
        %v1667 = vsel %vm582, %v1654, 0
        %1669 = vmatprep.subr.bf16.mxu0 0
        %1670 = vmatpush1.bf16.msra.mxu0 0
        %1671 = vmatprep.subr.bf16.mxu0 0
        %1672 = vmatpush1.bf16.msra.mxu0 0
        %1673 = vmatprep.subr.bf16.mxu0 0
        %1674 = vmatpush1.bf16.msra.mxu0 0
        %1675 = vmatprep.subr.bf16.mxu0 0
        %1676 = vmatpush1.bf16.msra.mxu0 0
        %1677 = vmatprep.subr.bf16.mxu0 0
        %1678 = vmatpush1.bf16.msra.mxu0 0
        %1679 = vmatprep.subr.bf16.mxu0 0
        %1680 = vmatpush1.bf16.msra.mxu0 0
        %1681 = vmatprep.subr.bf16.mxu0 0
        %1682 = vmatpush1.bf16.msra.mxu0 %v1660
        %1683 = vmatprep.subr.bf16.mxu0 0
        %1684 = vmatpush1.bf16.msra.mxu0 %v1658
        %1685 = vmatprep.subr.bf16.mxu0 0
        %1686 = vmatpush2.bf16.msra.mxu0 0
        %1687 = vmatprep.subr.bf16.mxu0 0
        %1688 = vmatpush2.bf16.msra.mxu0 0
        %1689 = vmatprep.subr.bf16.mxu0 0
        %1690 = vmatpush2.bf16.msra.mxu0 0
        %1691 = vmatprep.subr.bf16.mxu0 0
        %1692 = vmatpush2.bf16.msra.mxu0 0
        %1693 = vmatprep.subr.bf16.mxu0 0
        %1694 = vmatpush2.bf16.msra.mxu0 0
        %1695 = vmatprep.subr.bf16.mxu0 0
        %1696 = vmatpush2.bf16.msra.mxu0 0
        %1697 = vmatprep.subr.bf16.mxu0 0
        %1698 = vmatpush2.bf16.msra.mxu0 0
        %1699 = vmatprep.subr.bf16.mxu0 0
        %1700 = vmatpush2.bf16.msra.mxu0 0
        %1701 = vmatprep.mubr.bf16.mxu0 0
        %1702 = vmatmul.mubr.bf16.gmra.mxu0 %v1664
        %v1703 = vpop.f32.mrf.mxu0
        %v1704 = vadd.f32 0.0, %v1703
        %v1705 = vpop.f32.mrf.mxu0
        %v1706 = vpop.f32.mrf.mxu0
        %v1707 = vadd.f32 0.0, %v1706
        %v1708 = vpop.f32.mrf.mxu0
        %1709 = vmatprep.mubr.bf16.mxu0 0
        %1710 = vmatmul.mubr.bf16.gmra.mxu0 %v1667
        %v1711 = vpop.f32.mrf.mxu0
        %v1712 = vadd.f32 0.0, %v1711
        %v1713 = vpop.f32.mrf.mxu0
        %v1714 = vpop.f32.mrf.mxu0
        %v1715 = vadd.f32 0.0, %v1714
        %v1716 = vpop.f32.mrf.mxu0
        %1717 = vdwg.mxu0
        %1722 = vrot.lane.b32.xlu0 %v1704, 32
        %v1723 = vpop.permute.xlu0 %1722
        %1724 = vrot.lane.b32.xlu0 %v1707, 32
        %v1725 = vpop.permute.xlu0 %1724
        %1726 = vrot.lane.b32.xlu0 %v1712, 32
        %v1727 = vpop.permute.xlu0 %1726
        %1728 = vrot.lane.b32.xlu0 %v1715, 32
        %v1729 = vpop.permute.xlu0 %1728
        %1734 = vst.msk [vmem:[#allocation2 + $0x20] sm:$0xff] %vm955, %v1723
        %1735 = vst.msk [vmem:[#allocation2 + $0x28] sm:$0xff] %vm955, %v1725
        %1736 = vst.msk [vmem:[#allocation2 + $0x30] sm:$0xff] %vm955, %v1727
        %1737 = vst.msk [vmem:[#allocation2 + $0x38] sm:$0xff] %vm955, %v1729
        %1738 = vrot.lane.b32.xlu0 %v565, 64
        %v1739 = vpop.permute.xlu0 %1738
        %1740 = vrot.lane.b32.xlu0 %v568, 64
        %v1741 = vpop.permute.xlu0 %1740
        %1742 = vrot.lane.b32.xlu0 %v566, 64
        %v1743 = vpop.permute.xlu0 %1742
        %1744 = vrot.lane.b32.xlu0 %v569, 64
        %v1745 = vpop.permute.xlu0 %1744
        %v1747 = vsel %vm582, %v1739, 0
        %v1750 = vsel %vm582, %v1741, 0
        %v1753 = vsel %vm582, %v1743, 0
        %v1756 = vsel %vm582, %v1745, 0
        %1758 = vmatprep.subr.bf16.mxu0 0
        %1759 = vmatpush1.bf16.xpose.msra.mxu0 0
        %1760 = vmatprep.subr.bf16.mxu0 0
        %1761 = vmatpush1.bf16.xpose.msra.mxu0 0
        %1762 = vmatprep.subr.bf16.mxu0 0
        %1763 = vmatpush1.bf16.xpose.msra.mxu0 0
        %1764 = vmatprep.subr.bf16.mxu0 0
        %1765 = vmatpush1.bf16.xpose.msra.mxu0 0
        %1766 = vmatprep.subr.bf16.mxu0 0
        %1767 = vmatpush1.bf16.xpose.msra.mxu0 0
        %1768 = vmatprep.subr.bf16.mxu0 0
        %1769 = vmatpush1.bf16.xpose.msra.mxu0 0
        %1770 = vmatprep.subr.bf16.mxu0 0
        %1771 = vmatpush1.bf16.xpose.msra.mxu0 %v1756
        %1772 = vmatprep.subr.bf16.mxu0 0
        %1773 = vmatpush1.bf16.xpose.msra.mxu0 %v1753
        %1774 = vmatprep.subr.bf16.mxu0 0
        %1775 = vmatpush2.bf16.xpose.msra.mxu0 0
        %1776 = vmatprep.subr.bf16.mxu0 0
        %1777 = vmatpush2.bf16.xpose.msra.mxu0 0
        %1778 = vmatprep.subr.bf16.mxu0 0
        %1779 = vmatpush2.bf16.xpose.msra.mxu0 0
        %1780 = vmatprep.subr.bf16.mxu0 0
        %1781 = vmatpush2.bf16.xpose.msra.mxu0 0
        %1782 = vmatprep.subr.bf16.mxu0 0
        %1783 = vmatpush2.bf16.xpose.msra.mxu0 0
        %1784 = vmatprep.subr.bf16.mxu0 0
        %1785 = vmatpush2.bf16.xpose.msra.mxu0 0
        %1786 = vmatprep.subr.bf16.mxu0 0
        %1787 = vmatpush2.bf16.xpose.msra.mxu0 0
        %1788 = vmatprep.subr.bf16.mxu0 0
        %1789 = vmatpush2.bf16.xpose.msra.mxu0 0
        %1790 = vmatprep.mubr.bf16.mxu0 0
        %1791 = vmatmul.mubr.bf16.gmra.mxu0 %v1747
        %v1792 = vpop.f32.mrf.mxu0
        %v1793 = vadd.f32 0.0, %v1792
        %v1794 = vpop.f32.mrf.mxu0
        %v1795 = vpop.f32.mrf.mxu0
        %v1796 = vadd.f32 0.0, %v1795
        %v1797 = vpop.f32.mrf.mxu0
        %1798 = vmatprep.mubr.bf16.mxu0 0
        %1799 = vmatmul.mubr.bf16.gmra.mxu0 %v1750
        %v1800 = vpop.f32.mrf.mxu0
        %v1801 = vadd.f32 0.0, %v1800
        %v1802 = vpop.f32.mrf.mxu0
        %v1803 = vpop.f32.mrf.mxu0
        %v1804 = vadd.f32 0.0, %v1803
        %v1805 = vpop.f32.mrf.mxu0
        %1806 = vdwg.mxu0
        %v1807 = vsel %vm578, %v1793, -1e+30
        %v1808 = vsel %vm579, %v1796, -1e+30
        %v1809 = vsel %vm580, %v1801, -1e+30
        %v1810 = vsel %vm581, %v1804, -1e+30
        %v1811 = vsel %vm582, %v1807, -inf
        %1812 = vmax.xlane.f32.xlu0 %v1811
        %v1813 = vpop.xlane.xlu0 %1812
        %v1814 = vsel %vm582, %v1808, -inf
        %1815 = vmax.xlane.f32.xlu0 %v1814
        %v1816 = vpop.xlane.xlu0 %1815
        %v1817 = vsel %vm582, %v1809, -inf
        %1818 = vmax.xlane.f32.xlu0 %v1817
        %v1819 = vpop.xlane.xlu0 %1818
        %v1820 = vsel %vm582, %v1810, -inf
        %1821 = vmax.xlane.f32.xlu0 %v1820
        %v1822 = vpop.xlane.xlu0 %1821
        %v1823 = vsub.f32 %v1807, %v1813
        %v1824 = vsub.f32 %v1808, %v1816
        %v1825 = vsub.f32 %v1809, %v1819
        %v1826 = vsub.f32 %v1810, %v1822
        %v1827 = vmul.f32 %v1823, 1.442695
        %v1828 = vpow.pop %v1827
        %v1829 = vmul.f32 %v1824, 1.442695
        %v1830 = vpow.pop %v1829
        %v1831 = vmul.f32 %v1825, 1.442695
        %v1832 = vpow.pop %v1831
        %v1833 = vmul.f32 %v1826, 1.442695
        %v1834 = vpow.pop %v1833
        %v1835 = vsel %vm582, %v1828, 0.0
        %1836 = vadd.xlane.f32.xlu0 %v1835
        %v1837 = vpop.xlane.xlu0 %1836
        %v1838 = vsel %vm582, %v1830, 0.0
        %1839 = vadd.xlane.f32.xlu0 %v1838
        %v1840 = vpop.xlane.xlu0 %1839
        %v1841 = vsel %vm582, %v1832, 0.0
        %1842 = vadd.xlane.f32.xlu0 %v1841
        %v1843 = vpop.xlane.xlu0 %1842
        %v1844 = vsel %vm582, %v1834, 0.0
        %1845 = vadd.xlane.f32.xlu0 %v1844
        %v1846 = vpop.xlane.xlu0 %1845
        %v1847 = vrcp.pop %v1837
        %v1848 = vrcp.pop %v1840
        %v1849 = vrcp.pop %v1843
        %v1850 = vrcp.pop %v1846
        %v1851 = vmul.f32 %v1828, %v1847
        %v1852 = vmul.f32 %v1830, %v1848
        %v1853 = vmul.f32 %v1832, %v1849
        %v1854 = vmul.f32 %v1834, %v1850
        %v1855 = vpack.c.bf16 %v1852, %v1851
        %v1856 = vpack.c.bf16 %v1854, %v1853
        %1857 = vrot.lane.b32.xlu0 %v567, 64
        %v1858 = vpop.permute.xlu0 %1857
        %1859 = vrot.lane.b32.xlu0 %v570, 64
        %v1860 = vpop.permute.xlu0 %1859
        %v1864 = vsel %vm582, %v1855, 0
        %v1867 = vsel %vm582, %v1856, 0
        %1869 = vmatprep.subr.bf16.mxu0 0
        %1870 = vmatpush1.bf16.msra.mxu0 0
        %1871 = vmatprep.subr.bf16.mxu0 0
        %1872 = vmatpush1.bf16.msra.mxu0 0
        %1873 = vmatprep.subr.bf16.mxu0 0
        %1874 = vmatpush1.bf16.msra.mxu0 0
        %1875 = vmatprep.subr.bf16.mxu0 0
        %1876 = vmatpush1.bf16.msra.mxu0 0
        %1877 = vmatprep.subr.bf16.mxu0 0
        %1878 = vmatpush1.bf16.msra.mxu0 0
        %1879 = vmatprep.subr.bf16.mxu0 0
        %1880 = vmatpush1.bf16.msra.mxu0 0
        %1881 = vmatprep.subr.bf16.mxu0 0
        %1882 = vmatpush1.bf16.msra.mxu0 %v1860
        %1883 = vmatprep.subr.bf16.mxu0 0
        %1884 = vmatpush1.bf16.msra.mxu0 %v1858
        %1885 = vmatprep.subr.bf16.mxu0 0
        %1886 = vmatpush2.bf16.msra.mxu0 0
        %1887 = vmatprep.subr.bf16.mxu0 0
        %1888 = vmatpush2.bf16.msra.mxu0 0
        %1889 = vmatprep.subr.bf16.mxu0 0
        %1890 = vmatpush2.bf16.msra.mxu0 0
        %1891 = vmatprep.subr.bf16.mxu0 0
        %1892 = vmatpush2.bf16.msra.mxu0 0
        %1893 = vmatprep.subr.bf16.mxu0 0
        %1894 = vmatpush2.bf16.msra.mxu0 0
        %1895 = vmatprep.subr.bf16.mxu0 0
        %1896 = vmatpush2.bf16.msra.mxu0 0
        %1897 = vmatprep.subr.bf16.mxu0 0
        %1898 = vmatpush2.bf16.msra.mxu0 0
        %1899 = vmatprep.subr.bf16.mxu0 0
        %1900 = vmatpush2.bf16.msra.mxu0 0
        %1901 = vmatprep.mubr.bf16.mxu0 0
        %1902 = vmatmul.mubr.bf16.gmra.mxu0 %v1864
        %v1903 = vpop.f32.mrf.mxu0
        %v1904 = vadd.f32 0.0, %v1903
        %v1905 = vpop.f32.mrf.mxu0
        %v1906 = vpop.f32.mrf.mxu0
        %v1907 = vadd.f32 0.0, %v1906
        %v1908 = vpop.f32.mrf.mxu0
        %1909 = vmatprep.mubr.bf16.mxu0 0
        %1910 = vmatmul.mubr.bf16.gmra.mxu0 %v1867
        %v1911 = vpop.f32.mrf.mxu0
        %v1912 = vadd.f32 0.0, %v1911
        %v1913 = vpop.f32.mrf.mxu0
        %v1914 = vpop.f32.mrf.mxu0
        %v1915 = vadd.f32 0.0, %v1914
        %v1916 = vpop.f32.mrf.mxu0
        %1917 = vdwg.mxu0
        %1922 = vrot.lane.b32.xlu0 %v1904, 64
        %v1923 = vpop.permute.xlu0 %1922
        %1924 = vrot.lane.b32.xlu0 %v1907, 64
        %v1925 = vpop.permute.xlu0 %1924
        %1926 = vrot.lane.b32.xlu0 %v1912, 64
        %v1927 = vpop.permute.xlu0 %1926
        %1928 = vrot.lane.b32.xlu0 %v1915, 64
        %v1929 = vpop.permute.xlu0 %1928
        %1934 = vst.msk [vmem:[#allocation2 + $0x20] sm:$0xff] %vm1156, %v1923
        %1935 = vst.msk [vmem:[#allocation2 + $0x28] sm:$0xff] %vm1156, %v1925
        %1936 = vst.msk [vmem:[#allocation2 + $0x30] sm:$0xff] %vm1156, %v1927
        %1937 = vst.msk [vmem:[#allocation2 + $0x38] sm:$0xff] %vm1156, %v1929
        %1938 = vrot.lane.b32.xlu0 %v565, 32
        %v1939 = vpop.permute.xlu0 %1938
        %1940 = vrot.lane.b32.xlu0 %v568, 32
        %v1941 = vpop.permute.xlu0 %1940
        %1942 = vrot.lane.b32.xlu0 %v566, 32
        %v1943 = vpop.permute.xlu0 %1942
        %1944 = vrot.lane.b32.xlu0 %v569, 32
        %v1945 = vpop.permute.xlu0 %1944
        %v1947 = vsel %vm582, %v1939, 0
        %v1950 = vsel %vm582, %v1941, 0
        %v1953 = vsel %vm582, %v1943, 0
        %v1956 = vsel %vm582, %v1945, 0
        %1958 = vmatprep.subr.bf16.mxu0 0
        %1959 = vmatpush1.bf16.xpose.msra.mxu0 0
        %1960 = vmatprep.subr.bf16.mxu0 0
        %1961 = vmatpush1.bf16.xpose.msra.mxu0 0
        %1962 = vmatprep.subr.bf16.mxu0 0
        %1963 = vmatpush1.bf16.xpose.msra.mxu0 0
        %1964 = vmatprep.subr.bf16.mxu0 0
        %1965 = vmatpush1.bf16.xpose.msra.mxu0 0
        %1966 = vmatprep.subr.bf16.mxu0 0
        %1967 = vmatpush1.bf16.xpose.msra.mxu0 0
        %1968 = vmatprep.subr.bf16.mxu0 0
        %1969 = vmatpush1.bf16.xpose.msra.mxu0 0
        %1970 = vmatprep.subr.bf16.mxu0 0
        %1971 = vmatpush1.bf16.xpose.msra.mxu0 %v1956
        %1972 = vmatprep.subr.bf16.mxu0 0
        %1973 = vmatpush1.bf16.xpose.msra.mxu0 %v1953
        %1974 = vmatprep.subr.bf16.mxu0 0
        %1975 = vmatpush2.bf16.xpose.msra.mxu0 0
        %1976 = vmatprep.subr.bf16.mxu0 0
        %1977 = vmatpush2.bf16.xpose.msra.mxu0 0
        %1978 = vmatprep.subr.bf16.mxu0 0
        %1979 = vmatpush2.bf16.xpose.msra.mxu0 0
        %1980 = vmatprep.subr.bf16.mxu0 0
        %1981 = vmatpush2.bf16.xpose.msra.mxu0 0
        %1982 = vmatprep.subr.bf16.mxu0 0
        %1983 = vmatpush2.bf16.xpose.msra.mxu0 0
        %1984 = vmatprep.subr.bf16.mxu0 0
        %1985 = vmatpush2.bf16.xpose.msra.mxu0 0
        %1986 = vmatprep.subr.bf16.mxu0 0
        %1987 = vmatpush2.bf16.xpose.msra.mxu0 0
        %1988 = vmatprep.subr.bf16.mxu0 0
        %1989 = vmatpush2.bf16.xpose.msra.mxu0 0
        %1990 = vmatprep.mubr.bf16.mxu0 0
        %1991 = vmatmul.mubr.bf16.gmra.mxu0 %v1947
        %v1992 = vpop.f32.mrf.mxu0
        %v1993 = vadd.f32 0.0, %v1992
        %v1994 = vpop.f32.mrf.mxu0
        %v1995 = vpop.f32.mrf.mxu0
        %v1996 = vadd.f32 0.0, %v1995
        %v1997 = vpop.f32.mrf.mxu0
        %1998 = vmatprep.mubr.bf16.mxu0 0
        %1999 = vmatmul.mubr.bf16.gmra.mxu0 %v1950
        %v2000 = vpop.f32.mrf.mxu0
        %v2001 = vadd.f32 0.0, %v2000
        %v2002 = vpop.f32.mrf.mxu0
        %v2003 = vpop.f32.mrf.mxu0
        %v2004 = vadd.f32 0.0, %v2003
        %v2005 = vpop.f32.mrf.mxu0
        %2006 = vdwg.mxu0
        %v2007 = vsel %vm578, %v1993, -1e+30
        %v2008 = vsel %vm579, %v1996, -1e+30
        %v2009 = vsel %vm580, %v2001, -1e+30
        %v2010 = vsel %vm581, %v2004, -1e+30
        %v2011 = vsel %vm582, %v2007, -inf
        %2012 = vmax.xlane.f32.xlu0 %v2011
        %v2013 = vpop.xlane.xlu0 %2012
        %v2014 = vsel %vm582, %v2008, -inf
        %2015 = vmax.xlane.f32.xlu0 %v2014
        %v2016 = vpop.xlane.xlu0 %2015
        %v2017 = vsel %vm582, %v2009, -inf
        %2018 = vmax.xlane.f32.xlu0 %v2017
        %v2019 = vpop.xlane.xlu0 %2018
        %v2020 = vsel %vm582, %v2010, -inf
        %2021 = vmax.xlane.f32.xlu0 %v2020
        %v2022 = vpop.xlane.xlu0 %2021
        %v2023 = vsub.f32 %v2007, %v2013
        %v2024 = vsub.f32 %v2008, %v2016
        %v2025 = vsub.f32 %v2009, %v2019
        %v2026 = vsub.f32 %v2010, %v2022
        %v2027 = vmul.f32 %v2023, 1.442695
        %v2028 = vpow.pop %v2027
        %v2029 = vmul.f32 %v2024, 1.442695
        %v2030 = vpow.pop %v2029
        %v2031 = vmul.f32 %v2025, 1.442695
        %v2032 = vpow.pop %v2031
        %v2033 = vmul.f32 %v2026, 1.442695
        %v2034 = vpow.pop %v2033
        %v2035 = vsel %vm582, %v2028, 0.0
        %2036 = vadd.xlane.f32.xlu0 %v2035
        %v2037 = vpop.xlane.xlu0 %2036
        %v2038 = vsel %vm582, %v2030, 0.0
        %2039 = vadd.xlane.f32.xlu0 %v2038
        %v2040 = vpop.xlane.xlu0 %2039
        %v2041 = vsel %vm582, %v2032, 0.0
        %2042 = vadd.xlane.f32.xlu0 %v2041
        %v2043 = vpop.xlane.xlu0 %2042
        %v2044 = vsel %vm582, %v2034, 0.0
        %2045 = vadd.xlane.f32.xlu0 %v2044
        %v2046 = vpop.xlane.xlu0 %2045
        %v2047 = vrcp.pop %v2037
        %v2048 = vrcp.pop %v2040
        %v2049 = vrcp.pop %v2043
        %v2050 = vrcp.pop %v2046
        %v2051 = vmul.f32 %v2028, %v2047
        %v2052 = vmul.f32 %v2030, %v2048
        %v2053 = vmul.f32 %v2032, %v2049
        %v2054 = vmul.f32 %v2034, %v2050
        %v2055 = vpack.c.bf16 %v2052, %v2051
        %v2056 = vpack.c.bf16 %v2054, %v2053
        %2057 = vrot.lane.b32.xlu0 %v567, 32
        %v2058 = vpop.permute.xlu0 %2057
        %2059 = vrot.lane.b32.xlu0 %v570, 32
        %v2060 = vpop.permute.xlu0 %2059
        %v2064 = vsel %vm582, %v2055, 0
        %v2067 = vsel %vm582, %v2056, 0
        %2069 = vmatprep.subr.bf16.mxu0 0
        %2070 = vmatpush1.bf16.msra.mxu0 0
        %2071 = vmatprep.subr.bf16.mxu0 0
        %2072 = vmatpush1.bf16.msra.mxu0 0
        %2073 = vmatprep.subr.bf16.mxu0 0
        %2074 = vmatpush1.bf16.msra.mxu0 0
        %2075 = vmatprep.subr.bf16.mxu0 0
        %2076 = vmatpush1.bf16.msra.mxu0 0
        %2077 = vmatprep.subr.bf16.mxu0 0
        %2078 = vmatpush1.bf16.msra.mxu0 0
        %2079 = vmatprep.subr.bf16.mxu0 0
        %2080 = vmatpush1.bf16.msra.mxu0 0
        %2081 = vmatprep.subr.bf16.mxu0 0
        %2082 = vmatpush1.bf16.msra.mxu0 %v2060
        %2083 = vmatprep.subr.bf16.mxu0 0
        %2084 = vmatpush1.bf16.msra.mxu0 %v2058
        %2085 = vmatprep.subr.bf16.mxu0 0
        %2086 = vmatpush2.bf16.msra.mxu0 0
        %2087 = vmatprep.subr.bf16.mxu0 0
        %2088 = vmatpush2.bf16.msra.mxu0 0
        %2089 = vmatprep.subr.bf16.mxu0 0
        %2090 = vmatpush2.bf16.msra.mxu0 0
        %2091 = vmatprep.subr.bf16.mxu0 0
        %2092 = vmatpush2.bf16.msra.mxu0 0
        %2093 = vmatprep.subr.bf16.mxu0 0
        %2094 = vmatpush2.bf16.msra.mxu0 0
        %2095 = vmatprep.subr.bf16.mxu0 0
        %2096 = vmatpush2.bf16.msra.mxu0 0
        %2097 = vmatprep.subr.bf16.mxu0 0
        %2098 = vmatpush2.bf16.msra.mxu0 0
        %2099 = vmatprep.subr.bf16.mxu0 0
        %2100 = vmatpush2.bf16.msra.mxu0 0
        %2101 = vmatprep.mubr.bf16.mxu0 0
        %2102 = vmatmul.mubr.bf16.gmra.mxu0 %v2064
        %v2103 = vpop.f32.mrf.mxu0
        %v2104 = vadd.f32 0.0, %v2103
        %v2105 = vpop.f32.mrf.mxu0
        %v2106 = vpop.f32.mrf.mxu0
        %v2107 = vadd.f32 0.0, %v2106
        %v2108 = vpop.f32.mrf.mxu0
        %2109 = vmatprep.mubr.bf16.mxu0 0
        %2110 = vmatmul.mubr.bf16.gmra.mxu0 %v2067
        %v2111 = vpop.f32.mrf.mxu0
        %v2112 = vadd.f32 0.0, %v2111
        %v2113 = vpop.f32.mrf.mxu0
        %v2114 = vpop.f32.mrf.mxu0
        %v2115 = vadd.f32 0.0, %v2114
        %v2116 = vpop.f32.mrf.mxu0
        %2117 = vdwg.mxu0
        %2122 = vrot.lane.b32.xlu0 %v2104, 96
        %v2123 = vpop.permute.xlu0 %2122
        %2124 = vrot.lane.b32.xlu0 %v2107, 96
        %v2125 = vpop.permute.xlu0 %2124
        %2126 = vrot.lane.b32.xlu0 %v2112, 96
        %v2127 = vpop.permute.xlu0 %2126
        %2128 = vrot.lane.b32.xlu0 %v2115, 96
        %v2129 = vpop.permute.xlu0 %2128
        %2134 = vst.msk [vmem:[#allocation2 + $0x20] sm:$0xff] %vm1357, %v2123
        %2135 = vst.msk [vmem:[#allocation2 + $0x28] sm:$0xff] %vm1357, %v2125
        %2136 = vst.msk [vmem:[#allocation2 + $0x30] sm:$0xff] %vm1357, %v2127
        %2137 = vst.msk [vmem:[#allocation2 + $0x38] sm:$0xff] %vm1357, %v2129
        %v2138 = vld [vmem:[#allocation2] sm:$0xff]
        %v2139 = vld [vmem:[#allocation2 + $0x8] sm:$0xff]
        %v2140 = vld [vmem:[#allocation2 + $0x10] sm:$0xff]
        %v2141 = vld [vmem:[#allocation2 + $0x18] sm:$0xff]
        %v2142 = vld [vmem:[#allocation2 + $0x20] sm:$0xff]
        %v2143 = vld [vmem:[#allocation2 + $0x28] sm:$0xff]
        %v2144 = vld [vmem:[#allocation2 + $0x30] sm:$0xff]
        %v2145 = vld [vmem:[#allocation2 + $0x38] sm:$0xff]
        %v2146 = vpack.c.bf16 %v2139, %v2138
        %v2147 = vpack.c.bf16 %v2141, %v2140
        %v2148 = vpack.c.bf16 %v2143, %v2142
        %v2149 = vpack.c.bf16 %v2145, %v2144
        %v2150 = vld [vmem:[#allocation8] sm:$0xf]
        %v2151 = vld [vmem:[#allocation8 + $0x4] sm:$0xf]
        %v2152 = vld [vmem:[#allocation8 + $0x8] sm:$0xf]
        %v2153 = vld [vmem:[#allocation8 + $0xc] sm:$0xf]
        %v2154 = vld [vmem:[#allocation8 + $0x10] sm:$0xf]
        %v2155 = vld [vmem:[#allocation8 + $0x14] sm:$0xf]
        %v2156 = vld [vmem:[#allocation8 + $0x18] sm:$0xf]
        %v2157 = vld [vmem:[#allocation8 + $0x1c] sm:$0xf]
        %v2158 = vld [vmem:[#allocation8 + $0x20] sm:$0xf]
        %v2159 = vld [vmem:[#allocation8 + $0x24] sm:$0xf]
        %v2160 = vld [vmem:[#allocation8 + $0x28] sm:$0xf]
        %v2161 = vld [vmem:[#allocation8 + $0x2c] sm:$0xf]
        %v2162 = vld [vmem:[#allocation8 + $0x30] sm:$0xf]
        %v2163 = vld [vmem:[#allocation8 + $0x34] sm:$0xf]
        %v2164 = vld [vmem:[#allocation8 + $0x38] sm:$0xf]
        %v2165 = vld [vmem:[#allocation8 + $0x3c] sm:$0xf]
        %v2166 = vld [vmem:[%s3] sm:$0x1]
        %v2168 = vlaneseq
        %v2169 = vshrl.u32 %v2168, 7
        %v2170 = vsub.s32 0, %v2169
        %v2171 = vrot.slane %v2166, %v2170
        %v2189 = vunpack.c.l.b16 %v2150
        %v2190 = vunpack.c.l.b16 %v2151
        %v2191 = vunpack.c.l.b16 %v2152
        %v2192 = vunpack.c.l.b16 %v2153
        %v2193 = vunpack.c.l.b16 %v2154
        %v2194 = vunpack.c.l.b16 %v2155
        %v2195 = vunpack.c.l.b16 %v2156
        %v2196 = vunpack.c.l.b16 %v2157
        %v2197 = vunpack.c.l.b16 %v2158
        %v2198 = vunpack.c.l.b16 %v2159
        %v2199 = vunpack.c.l.b16 %v2160
        %v2200 = vunpack.c.l.b16 %v2161
        %v2201 = vunpack.c.l.b16 %v2162
        %v2202 = vunpack.c.l.b16 %v2163
        %v2203 = vunpack.c.l.b16 %v2164
        %v2204 = vunpack.c.l.b16 %v2165
        %v2205 = vpack.c.b16 %v2190, %v2189
        %v2206 = vpack.c.b16 %v2192, %v2191
        %v2207 = vpack.c.b16 %v2194, %v2193
        %v2208 = vpack.c.b16 %v2196, %v2195
        %v2209 = vpack.c.b16 %v2198, %v2197
        %v2210 = vpack.c.b16 %v2200, %v2199
        %v2211 = vpack.c.b16 %v2202, %v2201
        %v2212 = vpack.c.b16 %v2204, %v2203
        %2221 = vmatprep.subr.bf16.mxu0 0
        %2222 = vmatpush1.bf16.msra.mxu0 %v2212
        %2223 = vmatprep.subr.bf16.mxu0 0
        %2224 = vmatpush1.bf16.msra.mxu0 %v2211
        %2225 = vmatprep.subr.bf16.mxu0 0
        %2226 = vmatpush1.bf16.msra.mxu0 %v2210
        %2227 = vmatprep.subr.bf16.mxu0 0
        %2228 = vmatpush1.bf16.msra.mxu0 %v2209
        %2229 = vmatprep.subr.bf16.mxu0 0
        %2230 = vmatpush1.bf16.msra.mxu0 %v2208
        %2231 = vmatprep.subr.bf16.mxu0 0
        %2232 = vmatpush1.bf16.msra.mxu0 %v2207
        %2233 = vmatprep.subr.bf16.mxu0 0
        %2234 = vmatpush1.bf16.msra.mxu0 %v2206
        %2235 = vmatprep.subr.bf16.mxu0 0
        %2236 = vmatpush1.bf16.msra.mxu0 %v2205
        %2237 = vmatprep.subr.bf16.mxu0 0
        %2238 = vmatpush2.bf16.msra.mxu0 0
        %2239 = vmatprep.subr.bf16.mxu0 0
        %2240 = vmatpush2.bf16.msra.mxu0 0
        %2241 = vmatprep.subr.bf16.mxu0 0
        %2242 = vmatpush2.bf16.msra.mxu0 0
        %2243 = vmatprep.subr.bf16.mxu0 0
        %2244 = vmatpush2.bf16.msra.mxu0 0
        %2245 = vmatprep.subr.bf16.mxu0 0
        %2246 = vmatpush2.bf16.msra.mxu0 0
        %2247 = vmatprep.subr.bf16.mxu0 0
        %2248 = vmatpush2.bf16.msra.mxu0 0
        %2249 = vmatprep.subr.bf16.mxu0 0
        %2250 = vmatpush2.bf16.msra.mxu0 0
        %2251 = vmatprep.subr.bf16.mxu0 0
        %2252 = vmatpush2.bf16.msra.mxu0 0
        %2253 = vmatprep.mubr.bf16.mxu0 0
        %2254 = vmatmul.mubr.bf16.gmra.mxu0 %v2146
        %v2255 = vpop.f32.mrf.mxu0
        %v2256 = vadd.f32 %v2171, %v2255
        %v2257 = vpop.f32.mrf.mxu0
        %v2258 = vpop.f32.mrf.mxu0
        %v2259 = vadd.f32 %v2171, %v2258
        %v2260 = vpop.f32.mrf.mxu0
        %2261 = vmatprep.mubr.bf16.mxu0 0
        %2262 = vmatmul.mubr.bf16.gmra.mxu0 %v2147
        %v2263 = vpop.f32.mrf.mxu0
        %v2264 = vadd.f32 %v2171, %v2263
        %v2265 = vpop.f32.mrf.mxu0
        %v2266 = vpop.f32.mrf.mxu0
        %v2267 = vadd.f32 %v2171, %v2266
        %v2268 = vpop.f32.mrf.mxu0
        %2269 = vmatprep.mubr.bf16.mxu0 0
        %2270 = vmatmul.mubr.bf16.gmra.mxu0 %v2148
        %v2271 = vpop.f32.mrf.mxu0
        %v2272 = vadd.f32 %v2171, %v2271
        %v2273 = vpop.f32.mrf.mxu0
        %v2274 = vpop.f32.mrf.mxu0
        %v2275 = vadd.f32 %v2171, %v2274
        %v2276 = vpop.f32.mrf.mxu0
        %2277 = vmatprep.mubr.bf16.mxu0 0
        %2278 = vmatmul.mubr.bf16.gmra.mxu0 %v2149
        %v2279 = vpop.f32.mrf.mxu0
        %v2280 = vadd.f32 %v2171, %v2279
        %v2281 = vpop.f32.mrf.mxu0
        %v2282 = vpop.f32.mrf.mxu0
        %v2283 = vadd.f32 %v2171, %v2282
        %v2284 = vpop.f32.mrf.mxu0
        %2285 = vdwg.mxu0
        %2286 = vst [vmem:[%s245] sm:$0xff] %v2256
        %2287 = vst [vmem:[%s245 + $0x8] sm:$0xff] %v2259
        %2288 = vst [vmem:[%s245 + $0x10] sm:$0xff] %v2264
        %2289 = vst [vmem:[%s245 + $0x18] sm:$0xff] %v2267
        %2290 = vst [vmem:[%s245 + $0x20] sm:$0xff] %v2272
        %2291 = vst [vmem:[%s245 + $0x28] sm:$0xff] %v2275
        %2292 = vst [vmem:[%s245 + $0x30] sm:$0xff] %v2280
        %2293 = vst [vmem:[%s245 + $0x38] sm:$0xff] %v2283
        %s2294 = sand.u32 %s119, 1
        %s2295 = scalar_lea.sflag [#allocation5], %s2294
        %s2296 = sand.u32 %s119, 1
        %s2297 = smul.addr %s2296, 64
        %s2298 = scalar_lea.vmem [#allocation9], %s2297
        // Predicated region
        $region49: #{multi_head_attention.1} parent=35 // pred_check
          %p2299 = pneg %p129
        $region50: #{multi_head_attention.1} parent=35 // pred_check_branch
          %2301 = sbr.rel (%p2299) target = $region52
        $region51: #{multi_head_attention.1} parent=35 // pred_region
          %s2302 = smul.u32 2, %s22
          %s2304 = ssub.s32 1024, 1024
          %2305 = vsyncadd %s2295, %s2304
          %s2306 = smul.addr %s2302, 4
          %s2307 = smul.addr %s2306, 128
          %s2308 = scalar_lea.hbm %s4, %s2307
          %s2309 = sshll.u32 %s2298, 4
          %s2310 = int_to_ptr.vmem [resolvable:$true] %s2309
          %2315 = dma.vmem_to_hbm [thread:$0]  %s2310, 1024, %s2308, %s2295, 128, 128, 8
        $region52: #{multi_head_attention.1} parent=35 // pred_fallthru
          _
      $region36: #{multi_head_attention.1} parent=5 // pred_fallthru
        _
      %p2316 = scmp.le.s32.totalorder 2, %s17
      // Predicated region
      $region53: #{multi_head_attention.1} parent=5 // pred_check
        %p2317 = pneg %p2316
      $region54: #{multi_head_attention.1} parent=5 // pred_check_branch
        %2319 = sbr.rel (%p2317) target = $region56
      $region55: #{multi_head_attention.1} parent=5 // pred_region
        %s2320 = ssub.s32 %s17, 2
        // Predicated region
        $region57: #{multi_head_attention.1} parent=55 // pred_check
          %p2321 = pneg %p135
        $region58: #{multi_head_attention.1} parent=55 // pred_check_branch
          %2323 = sbr.rel (%p2321) target = $region60
        $region59: #{multi_head_attention.1} parent=55 // pred_region
          %s2324 = sand.u32 %s120, 1
          %s2325 = scalar_lea.sflag [#allocation5], %s2324
          %s2326 = sand.u32 %s120, 1
          %s2327 = smul.addr %s2326, 64
          %s2328 = scalar_lea.vmem [#allocation9], %s2327
          %2329 = dma.done %s2325, 1024
        $region60: #{multi_head_attention.1} parent=55 // pred_fallthru
          _
      $region56: #{multi_head_attention.1} parent=5 // pred_fallthru
        _
    $region6: #{multi_head_attention.1} parent=1 // loop_footer
      %s21 = sadd.s32 1, %s17
    $region7: #{multi_head_attention.1} parent=1 // loop_footer_branch
      %16 = sbr.rel target = $region3
    $region8: #{multi_head_attention.1} parent=1 // loop_exit
      _
    %2330 = vsyncpa [#allocation4], 1
    %s2331 = scalar_lea.sflag [#allocation4], 1
    %2332 = vsyncpa %s2331, 1
    %2333 = vsyncpa [#allocation7], 1
    %2334 = vsyncpa [#allocation5], 1
    %s2335 = scalar_lea.sflag [#allocation5], 1
    %2336 = vsyncpa %s2335, 1

</llo_original>
